<compile_context>
chip_gen: v7x
topology: tpu7x:2x2x1
jax: 0.10.0
libtpu: 0.0.40
codegen_flags: <defaults>
</compile_context>

<pallas_src>
import functools
import math

import jax
import jax.numpy as jnp
from jax.experimental import pallas as pl
from jax.experimental.pallas import tpu as pltpu

# Per-channel normalization constants (from the PyTorch module).
IMAGENET_MEAN = jnp.array([0.485, 0.456, 0.406], jnp.float32)   # cancels in diff
IMAGENET_STD = jnp.array([0.229, 0.224, 0.225], jnp.float32)
CLIP_MEAN = jnp.array([0.48145466, 0.4578275, 0.40821073], jnp.float32)  # cancels
CLIP_STD = jnp.array([0.26862954, 0.26130258, 0.27577711], jnp.float32)

_VMEM = pl.BlockSpec(memory_space=pltpu.MemorySpace.VMEM)


def _pick_tile(dim, target):
    """Largest multiple of 128 <= target that divides dim, else full dim."""
    if dim % 128 != 0:
        return dim
    t = (min(target, dim) // 128) * 128
    while t >= 128:
        if dim % t == 0:
            return t
        t -= 128
    return dim


# ----------------------------------------------------------------------------
# One-time parameter preparation (outside jit / the forward pass):
#   fold per-branch 1/std into the projection rows, concatenate along D,
#   cast weights to bf16 (MXU-native; halves weight HBM traffic).
# ----------------------------------------------------------------------------
def prepare_params(raw_params, image_hw):
    H, W = image_hw
    HW = H * W
    inv_imnet = jnp.repeat(1.0 / IMAGENET_STD, HW)     # (CHW,) channel-major
    inv_clip = jnp.repeat(1.0 / CLIP_STD, HW)
    w_res = raw_params["resnet_w"] * inv_imnet[:, None]
    w_clip = raw_params["clip_w"] * inv_clip[:, None]
    w_cat = jnp.concatenate([w_res, w_clip], axis=1).astype(jnp.bfloat16)
    return {
        "w_cat": w_cat,                               # (CHW, D_res + D_clip) bf16
        "lpips_w": raw_params["lpips_w"],             # (F, C)
        "lpips_lin": raw_params["lpips_lin"],         # (F, 1)
    }


# ----------------------------------------------------------------------------
# Kernel 1: fused ResNet+CLIP feature-difference projection + squared-sum.
#   grid = (n_d_tiles, n_k_tiles); K innermost with f32 VMEM accumulator.
#   Per D tile emits sum((diff @ W_tile)^2) broadcast into a (1,8,128) slab.
# ----------------------------------------------------------------------------
def _fused_feature_kernel(o_ref, a_ref, w_ref, out_ref, acc_ref):
    k = pl.program_id(1)

    @pl.when(k == 0)
    def _():
        acc_ref[...] = jnp.zeros_like(acc_ref)

    # Means cancel; 1/std is pre-folded into the weight rows.
    d = (o_ref[...] - a_ref[...]).astype(w_ref.dtype)          # (B, tk) -> bf16
    acc_ref[...] += jnp.dot(d, w_ref[...],
                            preferred_element_type=jnp.float32)  # (B, tn) f32

    @pl.when(k == pl.num_programs(1) - 1)
    def _():
        s = jnp.sum(acc_ref[...] * acc_ref[...])
        out_ref[...] = jnp.broadcast_to(s, out_ref.shape)


def _feature_sq_diff_sums(orig, adv, w_cat, *, tk, tn):
    B, C, H, W = orig.shape
    CHW = C * H * W
    D = w_cat.shape[1]
    n_d = D // tn
    n_k = CHW // tk
    o = orig.reshape(B, CHW)
    a = adv.reshape(B, CHW)
    out = pl.pallas_call(
        _fused_feature_kernel,
        out_shape=jax.ShapeDtypeStruct((n_d, 8, 128), jnp.float32),
        grid_spec=pltpu.PrefetchScalarGridSpec(
            num_scalar_prefetch=0,
            grid=(n_d, n_k),
            in_specs=[
                pl.BlockSpec((B, tk), lambda j, k: (0, k)),
                pl.BlockSpec((B, tk), lambda j, k: (0, k)),
                pl.BlockSpec((tk, tn), lambda j, k: (k, j)),
            ],
            out_specs=pl.BlockSpec((1, 8, 128), lambda j, k: (j, 0, 0)),
            scratch_shapes=[pltpu.VMEM((B, tn), jnp.float32)],
        ),
        compiler_params=pltpu.CompilerParams(
            dimension_semantics=("parallel", "arbitrary")),
    )(o, a, w_cat)
    return out[:, 0, 0]   # (n_d,) per-D-tile sum of squared feature diffs


# ----------------------------------------------------------------------------
# Kernel 2: LPIPS-style perceptual distance (single-stage AlexNet proxy).
#   Layout: (C, B*H*W) so the whole batch is one lane-dense pass.
#   scale to [-1,1] -> 3 broadcast FMAs (channel mix, VPU not MXU) ->
#   unit-normalize over features (EUP rsqrt) -> weighted squared diff ->
#   fused spatial/batch/channel reduction -> scalar.
# ----------------------------------------------------------------------------
def _lpips_kernel(o_ref, a_ref, w_ref, lin_ref, out_ref, *, inv_p):
    C = o_ref.shape[0]
    eps = 1e-8
    ob = o_ref[...] * 2.0 - 1.0                     # (C, P), scaled to [-1,1]
    ab = a_ref[...] * 2.0 - 1.0
    w = w_ref[...]                                  # (F, C), C tiny (=3)

    # Channel mix as C broadcast FMAs — K=C=3 would waste >98% of the MXU.
    fo = w[:, 0:1] * ob[0:1, :]
    fa = w[:, 0:1] * ab[0:1, :]
    for c in range(1, C):                           # static unroll, C is tiny
        fo = fo + w[:, c:c + 1] * ob[c:c + 1, :]
        fa = fa + w[:, c:c + 1] * ab[c:c + 1, :]

    # Unit-normalize over the feature (sublane) axis; rsqrt runs on the EUP.
    fo = fo * jax.lax.rsqrt(jnp.sum(fo * fo, axis=0, keepdims=True) + eps)
    fa = fa * jax.lax.rsqrt(jnp.sum(fa * fa, axis=0, keepdims=True) + eps)

    d = fo - fa
    d2 = d * d                                      # (F, P)
    row = jnp.sum(d2, axis=1, keepdims=True)        # (F, 1) lane-axis reduce
    loss = jnp.sum(row * lin_ref[...]) * inv_p      # weighted + 1/(B*HW)
    out_ref[...] = jnp.broadcast_to(loss, (1, 1))


def lpips_proxy(orig, adv, w_mix, w_lin):
    B, C, H, W = orig.shape
    P = B * H * W
    # Layout plumbing in the wrapper: channel -> sublane, batch*pixels -> lane.
    o = jnp.transpose(orig, (1, 0, 2, 3)).reshape(C, P)
    a = jnp.transpose(adv, (1, 0, 2, 3)).reshape(C, P)
    kern = functools.partial(_lpips_kernel, inv_p=1.0 / float(P))
    return pl.pallas_call(
        kern,
        out_shape=jax.ShapeDtypeStruct((1, 1), jnp.float32),
        in_specs=[_VMEM, _VMEM, _VMEM, _VMEM],
        out_specs=_VMEM,
    )(o, a, w_mix, w_lin)[0, 0]


# ----------------------------------------------------------------------------
# SpeciousLoss forward
# ----------------------------------------------------------------------------
def specious_loss(orig_rgb, adv_rgb, params, *, d_resnet, d_clip,
                  perceptual_threshold=0.1, alpha=1.0, beta_resnet=0.5,
                  beta_clip=1.0, penalty_weight=10.0):
    B, C, H, W = orig_rgb.shape
    CHW = C * H * W

    # LPIPS branch (inputs scaled to [-1,1] inside the kernel; batch-mean scalar).
    lpips_val = lpips_proxy(orig_rgb, adv_rgb, params["lpips_w"], params["lpips_lin"])

    # Fused ResNet50 + CLIP branch: one pass over the concatenated (bf16)
    # projection weights, diff-before-matmul, in-kernel squared-sum reduction.
    # TODO(synk): CLIP's 224x224 bilinear resize preprocessing is omitted;
    #             features are computed at native resolution.
    tk = _pick_tile(CHW, 1024)
    tn = _pick_tile(math.gcd(d_resnet, d_clip), 512)
    assert tn % 128 == 0 and d_resnet % tn == 0 and d_clip % tn == 0, (
        "feature dims must be tileable by a multiple of 128")
    partials = _feature_sq_diff_sums(orig_rgb, adv_rgb, params["w_cat"], tk=tk, tn=tn)
    n_res = d_resnet // tn
    resnet_loss = jnp.sum(partials[:n_res]) / jnp.float32(B * d_resnet)
    clip_loss = jnp.sum(partials[n_res:]) / jnp.float32(B * d_clip)

    # Scalar combination (glue, plain JAX).
    feature_loss = beta_resnet * resnet_loss + beta_clip * clip_loss
    total = jnp.exp(alpha * lpips_val - feature_loss)
    penalty = penalty_weight * (lpips_val - perceptual_threshold)
    total = jnp.where(lpips_val > perceptual_threshold, total + penalty, total)
    return {
        "lpips": lpips_val,
        "resnet_loss": resnet_loss,
        "clip_loss": clip_loss,
        "feature_loss": feature_loss,
        "total_loss": total,
    }


if __name__ == "__main__":
    B, C, H, W = 2, 3, 16, 16
    CHW = C * H * W
    F_LPIPS = 64        # AlexNet conv1 channel count (proxy)
    D_RESNET = 2048     # ResNet50 pooled feature dim
    D_CLIP = 512        # CLIP ViT-B/32 embedding dim

    key = jax.random.PRNGKey(0)
    k_in, k_noise, k_lp, k_lin, k_res, k_clip = jax.random.split(key, 6)

    orig_rgb = jax.random.uniform(k_in, (B, C, H, W), jnp.float32)          # in [0,1]
    adv_rgb = jnp.clip(
        orig_rgb + 0.05 * jax.random.normal(k_noise, (B, C, H, W), jnp.float32),
        0.0, 1.0)

    # Deterministic synthetic parameters (stand-ins for pretrained weights).
    raw_params = {
        "lpips_w": 0.1 * jax.random.normal(k_lp, (F_LPIPS, C), jnp.float32),
        "lpips_lin": 0.1 * jnp.abs(jax.random.normal(k_lin, (F_LPIPS, 1), jnp.float32)),
        "resnet_w": jax.random.normal(k_res, (CHW, D_RESNET), jnp.float32) / jnp.sqrt(CHW),
        "clip_w": jax.random.normal(k_clip, (CHW, D_CLIP), jnp.float32) / jnp.sqrt(CHW),
    }
    # One-time weight preparation (fold 1/std, concat branches, cast to bf16).
    params = prepare_params(raw_params, (H, W))

    fn = jax.jit(functools.partial(specious_loss, d_resnet=D_RESNET, d_clip=D_CLIP))
    out = fn(orig_rgb, adv_rgb, params)
    out = jax.block_until_ready(out)

    assert set(out.keys()) == {"lpips", "resnet_loss", "clip_loss", "feature_loss", "total_loss"}
    assert all(jnp.isfinite(v) for v in out.values())
    print("KERNEL_OK")
</pallas_src>

<mosaic_0001>
module attributes {stable_mosaic.version = 11 : i64} {
  func.func @_fused_feature_kernel(%arg0: i32, %arg1: i32, %arg2: memref<2x768xf32, #tpu.memory_space<vmem>>, %arg3: memref<2x768xf32, #tpu.memory_space<vmem>>, %arg4: memref<768x512xbf16, #tpu.memory_space<vmem>>, %arg5: memref<1x8x128xf32, #tpu.memory_space<vmem>>, %arg6: memref<2x512xf32, #tpu.memory_space<vmem>>) attributes {dimension_semantics = [#tpu.dimension_semantics<parallel>, #tpu.dimension_semantics<arbitrary>], iteration_bounds = array<i64: 5, 1>, scalar_prefetch = 0 : i64, scratch_operands = 1 : i64, tpu.core_type = #tpu.core_type<tc>, window_params = [{transform_indices = @transform_0, window_bounds = array<i64: 2, 768>}, {transform_indices = @transform_1, window_bounds = array<i64: 2, 768>}, {transform_indices = @transform_2, window_bounds = array<i64: 768, 512>}, {transform_indices = @transform_3, window_bounds = array<i64: 1, 8, 128>}]} {
    %c0_i32 = arith.constant 0 : i32
    %0 = arith.cmpi eq, %arg1, %c0_i32 : i32
    %1 = arith.extui %0 : i1 to i32
    %c0_i32_0 = arith.constant 0 : i32
    %2 = arith.cmpi ne, %1, %c0_i32_0 : i32
    scf.if %2 {
      %cst_12 = arith.constant 0.000000e+00 : f32
      %15 = vector.broadcast %cst_12 : f32 to vector<2x512xf32>
      %c0_13 = arith.constant 0 : index
      %c0_14 = arith.constant 0 : index
      %16 = vector.load %arg6[%c0_13, %c0_14] : memref<2x512xf32, #tpu.memory_space<vmem>>, vector<2x512xf32>
      tpu.vector_store %arg6[%c0_13, %c0_14], %15 {strides = array<i32>} : memref<2x512xf32, #tpu.memory_space<vmem>>, vector<2x512xf32>,
    } else {
    }
    %c0 = arith.constant 0 : index
    %c0_1 = arith.constant 0 : index
    %3 = vector.load %arg2[%c0, %c0_1] : memref<2x768xf32, #tpu.memory_space<vmem>>, vector<2x768xf32>
    %c0_2 = arith.constant 0 : index
    %c0_3 = arith.constant 0 : index
    %4 = vector.load %arg3[%c0_2, %c0_3] : memref<2x768xf32, #tpu.memory_space<vmem>>, vector<2x768xf32>
    %5 = arith.subf %3, %4 : vector<2x768xf32>
    %6 = arith.truncf %5 : vector<2x768xf32> to vector<2x768xbf16>
    %c0_4 = arith.constant 0 : index
    %c0_5 = arith.constant 0 : index
    %7 = vector.load %arg6[%c0_4, %c0_5] : memref<2x512xf32, #tpu.memory_space<vmem>>, vector<2x512xf32>
    %c0_6 = arith.constant 0 : index
    %c0_7 = arith.constant 0 : index
    %8 = vector.load %arg4[%c0_6, %c0_7] : memref<768x512xbf16, #tpu.memory_space<vmem>>, vector<768x512xbf16>
    %cst = arith.constant dense<0.000000e+00> : vector<2x512xf32>
    %9 = tpu.matmul %6, %8, %cst {dimension_numbers = #tpu.dot_dimension_numbers<[1], [0], [0], [1], [0, 0, 1, 1], [], []>} : vector<2x768xbf16>, vector<768x512xbf16>, vector<2x512xf32> -> vector<2x512xf32>
    %10 = arith.addf %7, %9 : vector<2x512xf32>
    %c0_8 = arith.constant 0 : index
    %c0_9 = arith.constant 0 : index
    %11 = vector.load %arg6[%c0_8, %c0_9] : memref<2x512xf32, #tpu.memory_space<vmem>>, vector<2x512xf32>
    tpu.vector_store %arg6[%c0_8, %c0_9], %10 {strides = array<i32>} : memref<2x512xf32, #tpu.memory_space<vmem>>, vector<2x512xf32>,
    %c0_i32_10 = arith.constant 0 : i32
    %12 = arith.cmpi eq, %arg1, %c0_i32_10 : i32
    %13 = arith.extui %12 : i1 to i32
    %c0_i32_11 = arith.constant 0 : i32
    %14 = arith.cmpi ne, %13, %c0_i32_11 : i32
    scf.if %14 {
      %c0_12 = arith.constant 0 : index
      %c0_13 = arith.constant 0 : index
      %15 = vector.load %arg6[%c0_12, %c0_13] : memref<2x512xf32, #tpu.memory_space<vmem>>, vector<2x512xf32>
      %c0_14 = arith.constant 0 : index
      %c0_15 = arith.constant 0 : index
      %16 = vector.load %arg6[%c0_14, %c0_15] : memref<2x512xf32, #tpu.memory_space<vmem>>, vector<2x512xf32>
      %17 = arith.mulf %15, %16 : vector<2x512xf32>
      %18 = vector.shape_cast %17 : vector<2x512xf32> to vector<1x2x512xf32>
      %cst_16 = arith.constant dense<0.000000e+00> : vector<1xf32>
      %19 = vector.multi_reduction <add>, %18, %cst_16 [1, 2] : vector<1x2x512xf32> to vector<1xf32>
      %20 = vector.shape_cast %19 : vector<1xf32> to vector<1x1x1xf32>
      %21 = vector.extract %20[0, 0, 0] : f32 from vector<1x1x1xf32>
      %22 = vector.broadcast %21 : f32 to vector<1x8x128xf32>
      %c0_17 = arith.constant 0 : index
      %c0_18 = arith.constant 0 : index
      %c0_19 = arith.constant 0 : index
      %23 = vector.load %arg5[%c0_17, %c0_18, %c0_19] : memref<1x8x128xf32, #tpu.memory_space<vmem>>, vector<1x8x128xf32>
      tpu.vector_store %arg5[%c0_17, %c0_18, %c0_19], %22 {strides = array<i32>} : memref<1x8x128xf32, #tpu.memory_space<vmem>>, vector<1x8x128xf32>,
    } else {
    }
    return
  }
  func.func @transform_0(%arg0: i32, %arg1: i32) -> (i32, i32) {
    %c0_i32 = arith.constant 0 : i32
    %c0_i32_0 = arith.constant 0 : i32
    return %c0_i32, %arg1 : i32, i32
  }
  func.func @transform_1(%arg0: i32, %arg1: i32) -> (i32, i32) {
    %c0_i32 = arith.constant 0 : i32
    %c0_i32_0 = arith.constant 0 : i32
    return %c0_i32, %arg1 : i32, i32
  }
  func.func @transform_2(%arg0: i32, %arg1: i32) -> (i32, i32) {
    %c0_i32 = arith.constant 0 : i32
    return %arg1, %arg0 : i32, i32
  }
  func.func @transform_3(%arg0: i32, %arg1: i32) -> (i32, i32, i32) {
    %c0_i32 = arith.constant 0 : i32
    %c0_i32_0 = arith.constant 0 : i32
    %c0_i32_1 = arith.constant 0 : i32
    return %arg0, %c0_i32, %c0_i32_0 : i32, i32, i32
  }
}

module attributes {stable_mosaic.version = 11 : i64} {
  func.func @_lpips_kernel(%arg0: memref<3x512xf32, #tpu.memory_space<vmem>>, %arg1: memref<3x512xf32, #tpu.memory_space<vmem>>, %arg2: memref<64x3xf32, #tpu.memory_space<vmem>>, %arg3: memref<64x1xf32, #tpu.memory_space<vmem>>, %arg4: memref<1x1xf32, #tpu.memory_space<vmem>>) attributes {dimension_semantics = [], scalar_prefetch = 0 : i64, scratch_operands = 0 : i64, tpu.core_type = #tpu.core_type<tc>} {
    %c0 = arith.constant 0 : index
    %c0_0 = arith.constant 0 : index
    %0 = vector.load %arg0[%c0, %c0_0] : memref<3x512xf32, #tpu.memory_space<vmem>>, vector<3x512xf32>
    %cst = arith.constant 2.000000e+00 : f32
    %1 = vector.broadcast %cst : f32 to vector<3x512xf32>
    %2 = arith.mulf %0, %1 : vector<3x512xf32>
    %cst_1 = arith.constant 1.000000e+00 : f32
    %3 = vector.broadcast %cst_1 : f32 to vector<3x512xf32>
    %4 = arith.subf %2, %3 : vector<3x512xf32>
    %c0_2 = arith.constant 0 : index
    %c0_3 = arith.constant 0 : index
    %5 = vector.load %arg1[%c0_2, %c0_3] : memref<3x512xf32, #tpu.memory_space<vmem>>, vector<3x512xf32>
    %cst_4 = arith.constant 2.000000e+00 : f32
    %6 = vector.broadcast %cst_4 : f32 to vector<3x512xf32>
    %7 = arith.mulf %5, %6 : vector<3x512xf32>
    %cst_5 = arith.constant 1.000000e+00 : f32
    %8 = vector.broadcast %cst_5 : f32 to vector<3x512xf32>
    %9 = arith.subf %7, %8 : vector<3x512xf32>
    %c0_6 = arith.constant 0 : index
    %c0_7 = arith.constant 0 : index
    %10 = vector.load %arg2[%c0_6, %c0_7] : memref<64x3xf32, #tpu.memory_space<vmem>>, vector<64x3xf32>
    %11 = vector.extract_strided_slice %10 {offsets = [0, 0], sizes = [64, 1], strides = [1, 1]} : vector<64x3xf32> to vector<64x1xf32>
    %12 = vector.extract_strided_slice %4 {offsets = [0, 0], sizes = [1, 512], strides = [1, 1]} : vector<3x512xf32> to vector<1x512xf32>
    %13 = vector.broadcast %11 : vector<64x1xf32> to vector<64x512xf32>
    %14 = vector.broadcast %12 : vector<1x512xf32> to vector<64x512xf32>
    %15 = arith.mulf %13, %14 : vector<64x512xf32>
    %16 = vector.extract_strided_slice %10 {offsets = [0, 0], sizes = [64, 1], strides = [1, 1]} : vector<64x3xf32> to vector<64x1xf32>
    %17 = vector.extract_strided_slice %9 {offsets = [0, 0], sizes = [1, 512], strides = [1, 1]} : vector<3x512xf32> to vector<1x512xf32>
    %18 = vector.broadcast %16 : vector<64x1xf32> to vector<64x512xf32>
    %19 = vector.broadcast %17 : vector<1x512xf32> to vector<64x512xf32>
    %20 = arith.mulf %18, %19 : vector<64x512xf32>
    %21 = vector.extract_strided_slice %10 {offsets = [0, 1], sizes = [64, 1], strides = [1, 1]} : vector<64x3xf32> to vector<64x1xf32>
    %22 = vector.extract_strided_slice %4 {offsets = [1, 0], sizes = [1, 512], strides = [1, 1]} : vector<3x512xf32> to vector<1x512xf32>
    %23 = vector.broadcast %21 : vector<64x1xf32> to vector<64x512xf32>
    %24 = vector.broadcast %22 : vector<1x512xf32> to vector<64x512xf32>
    %25 = arith.mulf %23, %24 : vector<64x512xf32>
    %26 = arith.addf %15, %25 : vector<64x512xf32>
    %27 = vector.extract_strided_slice %10 {offsets = [0, 1], sizes = [64, 1], strides = [1, 1]} : vector<64x3xf32> to vector<64x1xf32>
    %28 = vector.extract_strided_slice %9 {offsets = [1, 0], sizes = [1, 512], strides = [1, 1]} : vector<3x512xf32> to vector<1x512xf32>
    %29 = vector.broadcast %27 : vector<64x1xf32> to vector<64x512xf32>
    %30 = vector.broadcast %28 : vector<1x512xf32> to vector<64x512xf32>
    %31 = arith.mulf %29, %30 : vector<64x512xf32>
    %32 = arith.addf %20, %31 : vector<64x512xf32>
    %33 = vector.extract_strided_slice %10 {offsets = [0, 2], sizes = [64, 1], strides = [1, 1]} : vector<64x3xf32> to vector<64x1xf32>
    %34 = vector.extract_strided_slice %4 {offsets = [2, 0], sizes = [1, 512], strides = [1, 1]} : vector<3x512xf32> to vector<1x512xf32>
    %35 = vector.broadcast %33 : vector<64x1xf32> to vector<64x512xf32>
    %36 = vector.broadcast %34 : vector<1x512xf32> to vector<64x512xf32>
    %37 = arith.mulf %35, %36 : vector<64x512xf32>
    %38 = arith.addf %26, %37 : vector<64x512xf32>
    %39 = vector.extract_strided_slice %10 {offsets = [0, 2], sizes = [64, 1], strides = [1, 1]} : vector<64x3xf32> to vector<64x1xf32>
    %40 = vector.extract_strided_slice %9 {offsets = [2, 0], sizes = [1, 512], strides = [1, 1]} : vector<3x512xf32> to vector<1x512xf32>
    %41 = vector.broadcast %39 : vector<64x1xf32> to vector<64x512xf32>
    %42 = vector.broadcast %40 : vector<1x512xf32> to vector<64x512xf32>
    %43 = arith.mulf %41, %42 : vector<64x512xf32>
    %44 = arith.addf %32, %43 : vector<64x512xf32>
    %45 = arith.mulf %38, %38 : vector<64x512xf32>
    %cst_8 = arith.constant dense<0.000000e+00> : vector<512xf32>
    %46 = vector.multi_reduction <add>, %45, %cst_8 [0] : vector<64x512xf32> to vector<512xf32>
    %47 = vector.shape_cast %46 : vector<512xf32> to vector<1x512xf32>
    %cst_9 = arith.constant 9.99999993E-9 : f32
    %48 = vector.broadcast %cst_9 : f32 to vector<1x512xf32>
    %49 = arith.addf %47, %48 : vector<1x512xf32>
    %50 = math.rsqrt %49 : vector<1x512xf32>
    %51 = vector.broadcast %50 : vector<1x512xf32> to vector<64x512xf32>
    %52 = arith.mulf %38, %51 : vector<64x512xf32>
    %53 = arith.mulf %44, %44 : vector<64x512xf32>
    %cst_10 = arith.constant dense<0.000000e+00> : vector<512xf32>
    %54 = vector.multi_reduction <add>, %53, %cst_10 [0] : vector<64x512xf32> to vector<512xf32>
    %55 = vector.shape_cast %54 : vector<512xf32> to vector<1x512xf32>
    %cst_11 = arith.constant 9.99999993E-9 : f32
    %56 = vector.broadcast %cst_11 : f32 to vector<1x512xf32>
    %57 = arith.addf %55, %56 : vector<1x512xf32>
    %58 = math.rsqrt %57 : vector<1x512xf32>
    %59 = vector.broadcast %58 : vector<1x512xf32> to vector<64x512xf32>
    %60 = arith.mulf %44, %59 : vector<64x512xf32>
    %61 = arith.subf %52, %60 : vector<64x512xf32>
    %62 = arith.mulf %61, %61 : vector<64x512xf32>
    %cst_12 = arith.constant dense<0.000000e+00> : vector<64xf32>
    %63 = vector.multi_reduction <add>, %62, %cst_12 [1] : vector<64x512xf32> to vector<64xf32>
    %64 = vector.shape_cast %63 : vector<64xf32> to vector<64x1xf32>
    %c0_13 = arith.constant 0 : index
    %c0_14 = arith.constant 0 : index
    %65 = vector.load %arg3[%c0_13, %c0_14] : memref<64x1xf32, #tpu.memory_space<vmem>>, vector<64x1xf32>
    %66 = arith.mulf %64, %65 : vector<64x1xf32>
    %67 = vector.shape_cast %66 : vector<64x1xf32> to vector<1x64x1xf32>
    %cst_15 = arith.constant dense<0.000000e+00> : vector<1xf32>
    %68 = vector.multi_reduction <add>, %67, %cst_15 [1, 2] : vector<1x64x1xf32> to vector<1xf32>
    %69 = vector.shape_cast %68 : vector<1xf32> to vector<1x1x1xf32>
    %70 = vector.extract %69[0, 0, 0] : f32 from vector<1x1x1xf32>
    %cst_16 = arith.constant 0.001953125 : f32
    %71 = arith.mulf %70, %cst_16 : f32
    %72 = vector.broadcast %71 : f32 to vector<1x1xf32>
    %c0_17 = arith.constant 0 : index
    %c0_18 = arith.constant 0 : index
    %73 = vector.load %arg4[%c0_17, %c0_18] : memref<1x1xf32, #tpu.memory_space<vmem>>, vector<1x1xf32>
    tpu.vector_store %arg4[%c0_17, %c0_18], %72 {strides = array<i32>} : memref<1x1xf32, #tpu.memory_space<vmem>>, vector<1x1xf32>,
    return
  }
}

</mosaic_0001>

<llo_original>
// kernel: specious_loss.2
$region0: #{specious_loss.2}
  #allocation0 [shape = 'u32[]', space=smem, size = 0x4, offset = 0x4, fixed_abs, tag = 'smem constant byte address 0x4 - core index']
  #allocation1 [shape = 'u32[144,128]{1,0:T(1,128)}', space=vmem, size = 0x12000, scoped, tag = 'internal scratch']
  %s0 = inlined_call_operand.vmem [shape: f32[3,512], index: 0, kind: input, shape index: {}]
  %s1 = inlined_call_operand.vmem [shape: f32[3,512], index: 1, kind: input, shape index: {}]
  %s2 = inlined_call_operand.vmem [shape: f32[64,3], index: 2, kind: input, shape index: {}]
  %s3 = inlined_call_operand.vmem [shape: f32[64,1], index: 3, kind: input, shape index: {}]
  %s4 = inlined_call_operand.hbm [shape: f32[1,1], index: 4, kind: output, shape index: {}]
  %s5 = sld [smem:[#allocation0]]
  $region26: #{specious_loss.2} parent=0
    _
  %s7 = ssub.s32 1, %s5
  %s8 = scalar_select 0, %s7, %s5
  $region1: #{specious_loss.2} parent=0
    #allocation2 [shape = 'u8[512]{0}', space=vmem, size = 0x400, scoped, tag = 'output window, operand 0, single buffered']
    #allocation3 [shape = 's32[1]{0}', space=sflag, size = 0x4, scoped, tag = 'scoped memory for specious_loss.2']
    %9 = vsyncpa [#allocation3], 0
    // Predicated region
    $region2: #{specious_loss.2} parent=1 // pred_check
      _
    $region3: #{specious_loss.2} parent=1 // pred_check_branch
      %11 = sbr.rel (0) target = $region5
    $region4: #{specious_loss.2} parent=1 // pred_region
      _
    $region5: #{specious_loss.2} parent=1 // pred_fallthru
      _
    // Predicated region
    $region6: #{specious_loss.2} parent=1 // pred_check
      _
    $region7: #{specious_loss.2} parent=1 // pred_check_branch
      %13 = sbr.rel (0) target = $region9
    $region8: #{specious_loss.2} parent=1 // pred_region
      _
    $region9: #{specious_loss.2} parent=1 // pred_fallthru
      _
    // Predicated region
    $region10: #{specious_loss.2} parent=1 // pred_check
      _
    $region11: #{specious_loss.2} parent=1 // pred_check_branch
      %15 = sbr.rel (0) target = $region13
    $region12: #{specious_loss.2} parent=1 // pred_region
      _
    $region13: #{specious_loss.2} parent=1 // pred_fallthru
      _
    // Predicated region
    $region14: #{specious_loss.2} parent=1 // pred_check
      _
    $region15: #{specious_loss.2} parent=1 // pred_check_branch
      %17 = sbr.rel (0) target = $region17
    $region16: #{specious_loss.2} parent=1 // pred_region
      _
    $region17: #{specious_loss.2} parent=1 // pred_fallthru
      _
    %v18 = vld [vmem:[%s0] sm:$0x77]
    %v19 = vld [vmem:[%s0 + $0x8] sm:$0x77]
    %v20 = vmul.f32 %v18, 2.0
    %v21 = vmul.f32 %v19, 2.0
    %v22 = vsub.f32 %v20, 1.0
    %v23 = vsub.f32 %v21, 1.0
    %v24 = vld [vmem:[%s1] sm:$0x77]
    %v25 = vld [vmem:[%s1 + $0x8] sm:$0x77]
    %v26 = vmul.f32 %v24, 2.0
    %v27 = vmul.f32 %v25, 2.0
    %v28 = vsub.f32 %v26, 1.0
    %v29 = vsub.f32 %v27, 1.0
    %v30 = vld [vmem:[%s2] sm:$0xff]
    %v31 = vld [vmem:[%s2 + $0x8] sm:$0xff]
    %v32 = vld [vmem:[%s2 + $0x10] sm:$0xff]
    %v33 = vld [vmem:[%s2 + $0x18] sm:$0xff]
    %v34 = vld [vmem:[%s2 + $0x20] sm:$0xff]
    %v35 = vld [vmem:[%s2 + $0x28] sm:$0xff]
    %v36 = vld [vmem:[%s2 + $0x30] sm:$0xff]
    %v37 = vld [vmem:[%s2 + $0x38] sm:$0xff]
    %39 = vset.pattern.permute.xlu0 0
    %40 = vperm.xlu0 %39, %v30
    %v41 = vpop.permute.xlu0 %40
    %44 = vset.pattern.permute.xlu0 0
    %45 = vperm.xlu0 %44, %v31
    %v46 = vpop.permute.xlu0 %45
    %49 = vset.pattern.permute.xlu0 0
    %50 = vperm.xlu0 %49, %v32
    %v51 = vpop.permute.xlu0 %50
    %54 = vset.pattern.permute.xlu0 0
    %55 = vperm.xlu0 %54, %v33
    %v56 = vpop.permute.xlu0 %55
    %59 = vset.pattern.permute.xlu0 0
    %60 = vperm.xlu0 %59, %v34
    %v61 = vpop.permute.xlu0 %60
    %64 = vset.pattern.permute.xlu0 0
    %65 = vperm.xlu0 %64, %v35
    %v66 = vpop.permute.xlu0 %65
    %69 = vset.pattern.permute.xlu0 0
    %70 = vperm.xlu0 %69, %v36
    %v71 = vpop.permute.xlu0 %70
    %74 = vset.pattern.permute.xlu0 0
    %75 = vperm.xlu0 %74, %v37
    %v76 = vpop.permute.xlu0 %75
    %v80 = vlaneseq
    %v81 = vshrl.u32 %v80, 7
    %v82 = vsub.s32 0, %v81
    %v83 = vrot.slane %v22, %v82
    %v84 = vlaneseq
    %v85 = vshrl.u32 %v84, 7
    %v86 = vsub.s32 4, %v85
    %v87 = vrot.slane %v22, %v86
    %v88 = vlaneseq
    %v89 = vshrl.u32 %v88, 7
    %v90 = vsub.s32 0, %v89
    %v91 = vrot.slane %v23, %v90
    %v92 = vlaneseq
    %v93 = vshrl.u32 %v92, 7
    %v94 = vsub.s32 4, %v93
    %v95 = vrot.slane %v23, %v94
    %v100 = vlaneseq
    %v101 = vshrl.u32 %v100, 7
    %v102 = vsub.s32 0, %v101
    %v103 = vrot.slane %v83, %v102
    %v104 = vlaneseq
    %v105 = vshrl.u32 %v104, 7
    %v106 = vsub.s32 0, %v105
    %v107 = vrot.slane %v87, %v106
    %v108 = vlaneseq
    %v109 = vshrl.u32 %v108, 7
    %v110 = vsub.s32 0, %v109
    %v111 = vrot.slane %v91, %v110
    %v112 = vlaneseq
    %v113 = vshrl.u32 %v112, 7
    %v114 = vsub.s32 0, %v113
    %v115 = vrot.slane %v95, %v114
    %v116 = vmul.f32 %v41, %v103
    %v117 = vmul.f32 %v41, %v107
    %v118 = vmul.f32 %v41, %v111
    %v119 = vmul.f32 %v41, %v115
    %v120 = vmul.f32 %v46, %v103
    %v121 = vmul.f32 %v46, %v107
    %v122 = vmul.f32 %v46, %v111
    %v123 = vmul.f32 %v46, %v115
    %v124 = vmul.f32 %v51, %v103
    %v125 = vmul.f32 %v51, %v107
    %v126 = vmul.f32 %v51, %v111
    %v127 = vmul.f32 %v51, %v115
    %v128 = vmul.f32 %v56, %v103
    %v129 = vmul.f32 %v56, %v107
    %v130 = vmul.f32 %v56, %v111
    %v131 = vmul.f32 %v56, %v115
    %v132 = vmul.f32 %v61, %v103
    %v133 = vmul.f32 %v61, %v107
    %v134 = vmul.f32 %v61, %v111
    %v135 = vmul.f32 %v61, %v115
    %v136 = vmul.f32 %v66, %v103
    %v137 = vmul.f32 %v66, %v107
    %v138 = vmul.f32 %v66, %v111
    %v139 = vmul.f32 %v66, %v115
    %v140 = vmul.f32 %v71, %v103
    %v141 = vmul.f32 %v71, %v107
    %v142 = vmul.f32 %v71, %v111
    %v143 = vmul.f32 %v71, %v115
    %v144 = vmul.f32 %v76, %v103
    %v145 = vmul.f32 %v76, %v107
    %v146 = vmul.f32 %v76, %v111
    %v147 = vmul.f32 %v76, %v115
    %v150 = vlaneseq
    %v151 = vshrl.u32 %v150, 7
    %v152 = vsub.s32 0, %v151
    %v153 = vrot.slane %v28, %v152
    %v154 = vlaneseq
    %v155 = vshrl.u32 %v154, 7
    %v156 = vsub.s32 4, %v155
    %v157 = vrot.slane %v28, %v156
    %v158 = vlaneseq
    %v159 = vshrl.u32 %v158, 7
    %v160 = vsub.s32 0, %v159
    %v161 = vrot.slane %v29, %v160
    %v162 = vlaneseq
    %v163 = vshrl.u32 %v162, 7
    %v164 = vsub.s32 4, %v163
    %v165 = vrot.slane %v29, %v164
    %v170 = vlaneseq
    %v171 = vshrl.u32 %v170, 7
    %v172 = vsub.s32 0, %v171
    %v173 = vrot.slane %v153, %v172
    %v174 = vlaneseq
    %v175 = vshrl.u32 %v174, 7
    %v176 = vsub.s32 0, %v175
    %v177 = vrot.slane %v157, %v176
    %v178 = vlaneseq
    %v179 = vshrl.u32 %v178, 7
    %v180 = vsub.s32 0, %v179
    %v181 = vrot.slane %v161, %v180
    %v182 = vlaneseq
    %v183 = vshrl.u32 %v182, 7
    %v184 = vsub.s32 0, %v183
    %v185 = vrot.slane %v165, %v184
    %v186 = vmul.f32 %v41, %v173
    %v187 = vmul.f32 %v41, %v177
    %v188 = vmul.f32 %v41, %v181
    %v189 = vmul.f32 %v41, %v185
    %v190 = vmul.f32 %v46, %v173
    %v191 = vmul.f32 %v46, %v177
    %v192 = vmul.f32 %v46, %v181
    %v193 = vmul.f32 %v46, %v185
    %v194 = vmul.f32 %v51, %v173
    %v195 = vmul.f32 %v51, %v177
    %v196 = vmul.f32 %v51, %v181
    %v197 = vmul.f32 %v51, %v185
    %v198 = vmul.f32 %v56, %v173
    %v199 = vmul.f32 %v56, %v177
    %v200 = vmul.f32 %v56, %v181
    %v201 = vmul.f32 %v56, %v185
    %v202 = vmul.f32 %v61, %v173
    %v203 = vmul.f32 %v61, %v177
    %v204 = vmul.f32 %v61, %v181
    %v205 = vmul.f32 %v61, %v185
    %v206 = vmul.f32 %v66, %v173
    %v207 = vmul.f32 %v66, %v177
    %v208 = vmul.f32 %v66, %v181
    %v209 = vmul.f32 %v66, %v185
    %v210 = vmul.f32 %v71, %v173
    %v211 = vmul.f32 %v71, %v177
    %v212 = vmul.f32 %v71, %v181
    %v213 = vmul.f32 %v71, %v185
    %v214 = vmul.f32 %v76, %v173
    %v215 = vmul.f32 %v76, %v177
    %v216 = vmul.f32 %v76, %v181
    %v217 = vmul.f32 %v76, %v185
    %218 = vset.pattern.permute.xlu0 1
    %219 = vperm.xlu0 %218, %v30
    %v220 = vpop.permute.xlu0 %219
    %222 = vset.pattern.permute.xlu0 1
    %223 = vperm.xlu0 %222, %v31
    %v224 = vpop.permute.xlu0 %223
    %226 = vset.pattern.permute.xlu0 1
    %227 = vperm.xlu0 %226, %v32
    %v228 = vpop.permute.xlu0 %227
    %230 = vset.pattern.permute.xlu0 1
    %231 = vperm.xlu0 %230, %v33
    %v232 = vpop.permute.xlu0 %231
    %234 = vset.pattern.permute.xlu0 1
    %235 = vperm.xlu0 %234, %v34
    %v236 = vpop.permute.xlu0 %235
    %238 = vset.pattern.permute.xlu0 1
    %239 = vperm.xlu0 %238, %v35
    %v240 = vpop.permute.xlu0 %239
    %242 = vset.pattern.permute.xlu0 1
    %243 = vperm.xlu0 %242, %v36
    %v244 = vpop.permute.xlu0 %243
    %246 = vset.pattern.permute.xlu0 1
    %247 = vperm.xlu0 %246, %v37
    %v248 = vpop.permute.xlu0 %247
    %v250 = vlaneseq
    %v251 = vshrl.u32 %v250, 7
    %v252 = vsub.s32 1, %v251
    %v253 = vrot.slane %v22, %v252
    %v254 = vlaneseq
    %v255 = vshrl.u32 %v254, 7
    %v256 = vsub.s32 5, %v255
    %v257 = vrot.slane %v22, %v256
    %v258 = vlaneseq
    %v259 = vshrl.u32 %v258, 7
    %v260 = vsub.s32 1, %v259
    %v261 = vrot.slane %v23, %v260
    %v262 = vlaneseq
    %v263 = vshrl.u32 %v262, 7
    %v264 = vsub.s32 5, %v263
    %v265 = vrot.slane %v23, %v264
    %v270 = vlaneseq
    %v271 = vshrl.u32 %v270, 7
    %v272 = vsub.s32 1, %v271
    %v273 = vrot.slane %v253, %v272
    %v274 = vlaneseq
    %v275 = vshrl.u32 %v274, 7
    %v276 = vsub.s32 1, %v275
    %v277 = vrot.slane %v257, %v276
    %v278 = vlaneseq
    %v279 = vshrl.u32 %v278, 7
    %v280 = vsub.s32 1, %v279
    %v281 = vrot.slane %v261, %v280
    %v282 = vlaneseq
    %v283 = vshrl.u32 %v282, 7
    %v284 = vsub.s32 1, %v283
    %v285 = vrot.slane %v265, %v284
    %v286 = vmul.f32 %v220, %v273
    %v287 = vmul.f32 %v220, %v277
    %v288 = vmul.f32 %v220, %v281
    %v289 = vmul.f32 %v220, %v285
    %v290 = vmul.f32 %v224, %v273
    %v291 = vmul.f32 %v224, %v277
    %v292 = vmul.f32 %v224, %v281
    %v293 = vmul.f32 %v224, %v285
    %v294 = vmul.f32 %v228, %v273
    %v295 = vmul.f32 %v228, %v277
    %v296 = vmul.f32 %v228, %v281
    %v297 = vmul.f32 %v228, %v285
    %v298 = vmul.f32 %v232, %v273
    %v299 = vmul.f32 %v232, %v277
    %v300 = vmul.f32 %v232, %v281
    %v301 = vmul.f32 %v232, %v285
    %v302 = vmul.f32 %v236, %v273
    %v303 = vmul.f32 %v236, %v277
    %v304 = vmul.f32 %v236, %v281
    %v305 = vmul.f32 %v236, %v285
    %v306 = vmul.f32 %v240, %v273
    %v307 = vmul.f32 %v240, %v277
    %v308 = vmul.f32 %v240, %v281
    %v309 = vmul.f32 %v240, %v285
    %v310 = vmul.f32 %v244, %v273
    %v311 = vmul.f32 %v244, %v277
    %v312 = vmul.f32 %v244, %v281
    %v313 = vmul.f32 %v244, %v285
    %v314 = vmul.f32 %v248, %v273
    %v315 = vmul.f32 %v248, %v277
    %v316 = vmul.f32 %v248, %v281
    %v317 = vmul.f32 %v248, %v285
    %v318 = vadd.f32 %v116, %v286
    %v319 = vadd.f32 %v117, %v287
    %v320 = vadd.f32 %v118, %v288
    %v321 = vadd.f32 %v119, %v289
    %v322 = vadd.f32 %v120, %v290
    %v323 = vadd.f32 %v121, %v291
    %v324 = vadd.f32 %v122, %v292
    %v325 = vadd.f32 %v123, %v293
    %v326 = vadd.f32 %v124, %v294
    %v327 = vadd.f32 %v125, %v295
    %v328 = vadd.f32 %v126, %v296
    %v329 = vadd.f32 %v127, %v297
    %v330 = vadd.f32 %v128, %v298
    %v331 = vadd.f32 %v129, %v299
    %v332 = vadd.f32 %v130, %v300
    %v333 = vadd.f32 %v131, %v301
    %v334 = vadd.f32 %v132, %v302
    %v335 = vadd.f32 %v133, %v303
    %v336 = vadd.f32 %v134, %v304
    %v337 = vadd.f32 %v135, %v305
    %v338 = vadd.f32 %v136, %v306
    %v339 = vadd.f32 %v137, %v307
    %v340 = vadd.f32 %v138, %v308
    %v341 = vadd.f32 %v139, %v309
    %v342 = vadd.f32 %v140, %v310
    %v343 = vadd.f32 %v141, %v311
    %v344 = vadd.f32 %v142, %v312
    %v345 = vadd.f32 %v143, %v313
    %v346 = vadd.f32 %v144, %v314
    %v347 = vadd.f32 %v145, %v315
    %v348 = vadd.f32 %v146, %v316
    %v349 = vadd.f32 %v147, %v317
    %v350 = vlaneseq
    %v351 = vshrl.u32 %v350, 7
    %v352 = vsub.s32 1, %v351
    %v353 = vrot.slane %v28, %v352
    %v354 = vlaneseq
    %v355 = vshrl.u32 %v354, 7
    %v356 = vsub.s32 5, %v355
    %v357 = vrot.slane %v28, %v356
    %v358 = vlaneseq
    %v359 = vshrl.u32 %v358, 7
    %v360 = vsub.s32 1, %v359
    %v361 = vrot.slane %v29, %v360
    %v362 = vlaneseq
    %v363 = vshrl.u32 %v362, 7
    %v364 = vsub.s32 5, %v363
    %v365 = vrot.slane %v29, %v364
    %v370 = vlaneseq
    %v371 = vshrl.u32 %v370, 7
    %v372 = vsub.s32 1, %v371
    %v373 = vrot.slane %v353, %v372
    %v374 = vlaneseq
    %v375 = vshrl.u32 %v374, 7
    %v376 = vsub.s32 1, %v375
    %v377 = vrot.slane %v357, %v376
    %v378 = vlaneseq
    %v379 = vshrl.u32 %v378, 7
    %v380 = vsub.s32 1, %v379
    %v381 = vrot.slane %v361, %v380
    %v382 = vlaneseq
    %v383 = vshrl.u32 %v382, 7
    %v384 = vsub.s32 1, %v383
    %v385 = vrot.slane %v365, %v384
    %v386 = vmul.f32 %v220, %v373
    %v387 = vmul.f32 %v220, %v377
    %v388 = vmul.f32 %v220, %v381
    %v389 = vmul.f32 %v220, %v385
    %v390 = vmul.f32 %v224, %v373
    %v391 = vmul.f32 %v224, %v377
    %v392 = vmul.f32 %v224, %v381
    %v393 = vmul.f32 %v224, %v385
    %v394 = vmul.f32 %v228, %v373
    %v395 = vmul.f32 %v228, %v377
    %v396 = vmul.f32 %v228, %v381
    %v397 = vmul.f32 %v228, %v385
    %v398 = vmul.f32 %v232, %v373
    %v399 = vmul.f32 %v232, %v377
    %v400 = vmul.f32 %v232, %v381
    %v401 = vmul.f32 %v232, %v385
    %v402 = vmul.f32 %v236, %v373
    %v403 = vmul.f32 %v236, %v377
    %v404 = vmul.f32 %v236, %v381
    %v405 = vmul.f32 %v236, %v385
    %v406 = vmul.f32 %v240, %v373
    %v407 = vmul.f32 %v240, %v377
    %v408 = vmul.f32 %v240, %v381
    %v409 = vmul.f32 %v240, %v385
    %v410 = vmul.f32 %v244, %v373
    %v411 = vmul.f32 %v244, %v377
    %v412 = vmul.f32 %v244, %v381
    %v413 = vmul.f32 %v244, %v385
    %v414 = vmul.f32 %v248, %v373
    %v415 = vmul.f32 %v248, %v377
    %v416 = vmul.f32 %v248, %v381
    %v417 = vmul.f32 %v248, %v385
    %v418 = vadd.f32 %v186, %v386
    %v419 = vadd.f32 %v187, %v387
    %v420 = vadd.f32 %v188, %v388
    %v421 = vadd.f32 %v189, %v389
    %v422 = vadd.f32 %v190, %v390
    %v423 = vadd.f32 %v191, %v391
    %v424 = vadd.f32 %v192, %v392
    %v425 = vadd.f32 %v193, %v393
    %v426 = vadd.f32 %v194, %v394
    %v427 = vadd.f32 %v195, %v395
    %v428 = vadd.f32 %v196, %v396
    %v429 = vadd.f32 %v197, %v397
    %v430 = vadd.f32 %v198, %v398
    %v431 = vadd.f32 %v199, %v399
    %v432 = vadd.f32 %v200, %v400
    %v433 = vadd.f32 %v201, %v401
    %v434 = vadd.f32 %v202, %v402
    %v435 = vadd.f32 %v203, %v403
    %v436 = vadd.f32 %v204, %v404
    %v437 = vadd.f32 %v205, %v405
    %v438 = vadd.f32 %v206, %v406
    %v439 = vadd.f32 %v207, %v407
    %v440 = vadd.f32 %v208, %v408
    %v441 = vadd.f32 %v209, %v409
    %v442 = vadd.f32 %v210, %v410
    %v443 = vadd.f32 %v211, %v411
    %v444 = vadd.f32 %v212, %v412
    %v445 = vadd.f32 %v213, %v413
    %v446 = vadd.f32 %v214, %v414
    %v447 = vadd.f32 %v215, %v415
    %v448 = vadd.f32 %v216, %v416
    %v449 = vadd.f32 %v217, %v417
    %450 = vset.pattern.permute.xlu0 2
    %451 = vperm.xlu0 %450, %v30
    %v452 = vpop.permute.xlu0 %451
    %454 = vset.pattern.permute.xlu0 2
    %455 = vperm.xlu0 %454, %v31
    %v456 = vpop.permute.xlu0 %455
    %458 = vset.pattern.permute.xlu0 2
    %459 = vperm.xlu0 %458, %v32
    %v460 = vpop.permute.xlu0 %459
    %462 = vset.pattern.permute.xlu0 2
    %463 = vperm.xlu0 %462, %v33
    %v464 = vpop.permute.xlu0 %463
    %466 = vset.pattern.permute.xlu0 2
    %467 = vperm.xlu0 %466, %v34
    %v468 = vpop.permute.xlu0 %467
    %470 = vset.pattern.permute.xlu0 2
    %471 = vperm.xlu0 %470, %v35
    %v472 = vpop.permute.xlu0 %471
    %474 = vset.pattern.permute.xlu0 2
    %475 = vperm.xlu0 %474, %v36
    %v476 = vpop.permute.xlu0 %475
    %478 = vset.pattern.permute.xlu0 2
    %479 = vperm.xlu0 %478, %v37
    %v480 = vpop.permute.xlu0 %479
    %v482 = vlaneseq
    %v483 = vshrl.u32 %v482, 7
    %v484 = vsub.s32 2, %v483
    %v485 = vrot.slane %v22, %v484
    %v486 = vlaneseq
    %v487 = vshrl.u32 %v486, 7
    %v488 = vsub.s32 6, %v487
    %v489 = vrot.slane %v22, %v488
    %v490 = vlaneseq
    %v491 = vshrl.u32 %v490, 7
    %v492 = vsub.s32 2, %v491
    %v493 = vrot.slane %v23, %v492
    %v494 = vlaneseq
    %v495 = vshrl.u32 %v494, 7
    %v496 = vsub.s32 6, %v495
    %v497 = vrot.slane %v23, %v496
    %v502 = vlaneseq
    %v503 = vshrl.u32 %v502, 7
    %v504 = vsub.s32 2, %v503
    %v505 = vrot.slane %v485, %v504
    %v506 = vlaneseq
    %v507 = vshrl.u32 %v506, 7
    %v508 = vsub.s32 2, %v507
    %v509 = vrot.slane %v489, %v508
    %v510 = vlaneseq
    %v511 = vshrl.u32 %v510, 7
    %v512 = vsub.s32 2, %v511
    %v513 = vrot.slane %v493, %v512
    %v514 = vlaneseq
    %v515 = vshrl.u32 %v514, 7
    %v516 = vsub.s32 2, %v515
    %v517 = vrot.slane %v497, %v516
    %v518 = vmul.f32 %v452, %v505
    %v519 = vmul.f32 %v452, %v509
    %v520 = vmul.f32 %v452, %v513
    %v521 = vmul.f32 %v452, %v517
    %v522 = vmul.f32 %v456, %v505
    %v523 = vmul.f32 %v456, %v509
    %v524 = vmul.f32 %v456, %v513
    %v525 = vmul.f32 %v456, %v517
    %v526 = vmul.f32 %v460, %v505
    %v527 = vmul.f32 %v460, %v509
    %v528 = vmul.f32 %v460, %v513
    %v529 = vmul.f32 %v460, %v517
    %v530 = vmul.f32 %v464, %v505
    %v531 = vmul.f32 %v464, %v509
    %v532 = vmul.f32 %v464, %v513
    %v533 = vmul.f32 %v464, %v517
    %v534 = vmul.f32 %v468, %v505
    %v535 = vmul.f32 %v468, %v509
    %v536 = vmul.f32 %v468, %v513
    %v537 = vmul.f32 %v468, %v517
    %v538 = vmul.f32 %v472, %v505
    %v539 = vmul.f32 %v472, %v509
    %v540 = vmul.f32 %v472, %v513
    %v541 = vmul.f32 %v472, %v517
    %v542 = vmul.f32 %v476, %v505
    %v543 = vmul.f32 %v476, %v509
    %v544 = vmul.f32 %v476, %v513
    %v545 = vmul.f32 %v476, %v517
    %v546 = vmul.f32 %v480, %v505
    %v547 = vmul.f32 %v480, %v509
    %v548 = vmul.f32 %v480, %v513
    %v549 = vmul.f32 %v480, %v517
    %v550 = vadd.f32 %v318, %v518
    %v551 = vadd.f32 %v319, %v519
    %v552 = vadd.f32 %v320, %v520
    %v553 = vadd.f32 %v321, %v521
    %v554 = vadd.f32 %v322, %v522
    %v555 = vadd.f32 %v323, %v523
    %v556 = vadd.f32 %v324, %v524
    %v557 = vadd.f32 %v325, %v525
    %v558 = vadd.f32 %v326, %v526
    %v559 = vadd.f32 %v327, %v527
    %v560 = vadd.f32 %v328, %v528
    %v561 = vadd.f32 %v329, %v529
    %v562 = vadd.f32 %v330, %v530
    %v563 = vadd.f32 %v331, %v531
    %v564 = vadd.f32 %v332, %v532
    %v565 = vadd.f32 %v333, %v533
    %v566 = vadd.f32 %v334, %v534
    %v567 = vadd.f32 %v335, %v535
    %v568 = vadd.f32 %v336, %v536
    %v569 = vadd.f32 %v337, %v537
    %v570 = vadd.f32 %v338, %v538
    %v571 = vadd.f32 %v339, %v539
    %v572 = vadd.f32 %v340, %v540
    %v573 = vadd.f32 %v341, %v541
    %v574 = vadd.f32 %v342, %v542
    %v575 = vadd.f32 %v343, %v543
    %v576 = vadd.f32 %v344, %v544
    %v577 = vadd.f32 %v345, %v545
    %v578 = vadd.f32 %v346, %v546
    %v579 = vadd.f32 %v347, %v547
    %v580 = vadd.f32 %v348, %v548
    %v581 = vadd.f32 %v349, %v549
    %v582 = vlaneseq
    %v583 = vshrl.u32 %v582, 7
    %v584 = vsub.s32 2, %v583
    %v585 = vrot.slane %v28, %v584
    %v586 = vlaneseq
    %v587 = vshrl.u32 %v586, 7
    %v588 = vsub.s32 6, %v587
    %v589 = vrot.slane %v28, %v588
    %v590 = vlaneseq
    %v591 = vshrl.u32 %v590, 7
    %v592 = vsub.s32 2, %v591
    %v593 = vrot.slane %v29, %v592
    %v594 = vlaneseq
    %v595 = vshrl.u32 %v594, 7
    %v596 = vsub.s32 6, %v595
    %v597 = vrot.slane %v29, %v596
    %v602 = vlaneseq
    %v603 = vshrl.u32 %v602, 7
    %v604 = vsub.s32 2, %v603
    %v605 = vrot.slane %v585, %v604
    %v606 = vlaneseq
    %v607 = vshrl.u32 %v606, 7
    %v608 = vsub.s32 2, %v607
    %v609 = vrot.slane %v589, %v608
    %v610 = vlaneseq
    %v611 = vshrl.u32 %v610, 7
    %v612 = vsub.s32 2, %v611
    %v613 = vrot.slane %v593, %v612
    %v614 = vlaneseq
    %v615 = vshrl.u32 %v614, 7
    %v616 = vsub.s32 2, %v615
    %v617 = vrot.slane %v597, %v616
    %v618 = vmul.f32 %v452, %v605
    %v619 = vmul.f32 %v452, %v609
    %v620 = vmul.f32 %v452, %v613
    %v621 = vmul.f32 %v452, %v617
    %v622 = vmul.f32 %v456, %v605
    %v623 = vmul.f32 %v456, %v609
    %v624 = vmul.f32 %v456, %v613
    %v625 = vmul.f32 %v456, %v617
    %v626 = vmul.f32 %v460, %v605
    %v627 = vmul.f32 %v460, %v609
    %v628 = vmul.f32 %v460, %v613
    %v629 = vmul.f32 %v460, %v617
    %v630 = vmul.f32 %v464, %v605
    %v631 = vmul.f32 %v464, %v609
    %v632 = vmul.f32 %v464, %v613
    %v633 = vmul.f32 %v464, %v617
    %v634 = vmul.f32 %v468, %v605
    %v635 = vmul.f32 %v468, %v609
    %v636 = vmul.f32 %v468, %v613
    %v637 = vmul.f32 %v468, %v617
    %v638 = vmul.f32 %v472, %v605
    %v639 = vmul.f32 %v472, %v609
    %v640 = vmul.f32 %v472, %v613
    %v641 = vmul.f32 %v472, %v617
    %v642 = vmul.f32 %v476, %v605
    %v643 = vmul.f32 %v476, %v609
    %v644 = vmul.f32 %v476, %v613
    %v645 = vmul.f32 %v476, %v617
    %v646 = vmul.f32 %v480, %v605
    %v647 = vmul.f32 %v480, %v609
    %v648 = vmul.f32 %v480, %v613
    %v649 = vmul.f32 %v480, %v617
    %v650 = vadd.f32 %v418, %v618
    %v651 = vadd.f32 %v419, %v619
    %v652 = vadd.f32 %v420, %v620
    %v653 = vadd.f32 %v421, %v621
    %v654 = vadd.f32 %v422, %v622
    %v655 = vadd.f32 %v423, %v623
    %v656 = vadd.f32 %v424, %v624
    %v657 = vadd.f32 %v425, %v625
    %v658 = vadd.f32 %v426, %v626
    %v659 = vadd.f32 %v427, %v627
    %v660 = vadd.f32 %v428, %v628
    %v661 = vadd.f32 %v429, %v629
    %v662 = vadd.f32 %v430, %v630
    %v663 = vadd.f32 %v431, %v631
    %v664 = vadd.f32 %v432, %v632
    %v665 = vadd.f32 %v433, %v633
    %v666 = vadd.f32 %v434, %v634
    %v667 = vadd.f32 %v435, %v635
    %v668 = vadd.f32 %v436, %v636
    %v669 = vadd.f32 %v437, %v637
    %v670 = vadd.f32 %v438, %v638
    %v671 = vadd.f32 %v439, %v639
    %v672 = vadd.f32 %v440, %v640
    %v673 = vadd.f32 %v441, %v641
    %v674 = vadd.f32 %v442, %v642
    %v675 = vadd.f32 %v443, %v643
    %v676 = vadd.f32 %v444, %v644
    %v677 = vadd.f32 %v445, %v645
    %v678 = vadd.f32 %v446, %v646
    %v679 = vadd.f32 %v447, %v647
    %v680 = vadd.f32 %v448, %v648
    %v681 = vadd.f32 %v449, %v649
    %v682 = vmul.f32 %v550, %v550
    %v683 = vmul.f32 %v551, %v551
    %v684 = vmul.f32 %v552, %v552
    %v685 = vmul.f32 %v553, %v553
    %v686 = vmul.f32 %v554, %v554
    %v687 = vmul.f32 %v555, %v555
    %v688 = vmul.f32 %v556, %v556
    %v689 = vmul.f32 %v557, %v557
    %v690 = vmul.f32 %v558, %v558
    %v691 = vmul.f32 %v559, %v559
    %v692 = vmul.f32 %v560, %v560
    %v693 = vmul.f32 %v561, %v561
    %v694 = vmul.f32 %v562, %v562
    %v695 = vmul.f32 %v563, %v563
    %v696 = vmul.f32 %v564, %v564
    %v697 = vmul.f32 %v565, %v565
    %v698 = vmul.f32 %v566, %v566
    %v699 = vmul.f32 %v567, %v567
    %v700 = vmul.f32 %v568, %v568
    %v701 = vmul.f32 %v569, %v569
    %v702 = vmul.f32 %v570, %v570
    %v703 = vmul.f32 %v571, %v571
    %v704 = vmul.f32 %v572, %v572
    %v705 = vmul.f32 %v573, %v573
    %v706 = vmul.f32 %v574, %v574
    %v707 = vmul.f32 %v575, %v575
    %v708 = vmul.f32 %v576, %v576
    %v709 = vmul.f32 %v577, %v577
    %v710 = vmul.f32 %v578, %v578
    %v711 = vmul.f32 %v579, %v579
    %v712 = vmul.f32 %v580, %v580
    %v713 = vmul.f32 %v581, %v581
    %v714 = vadd.f32 %v682, %v686
    %v715 = vadd.f32 %v714, %v690
    %v716 = vadd.f32 %v715, %v694
    %v717 = vadd.f32 %v716, %v698
    %v718 = vadd.f32 %v717, %v702
    %v719 = vadd.f32 %v718, %v706
    %v720 = vadd.f32 %v719, %v710
    %v721 = vrot.slane %v720, 4
    %v722 = vadd.f32 %v720, %v721
    %v723 = vrot.slane %v722, 2
    %v724 = vadd.f32 %v722, %v723
    %v725 = vrot.slane %v724, 1
    %v726 = vadd.f32 %v724, %v725
    %v727 = vadd.f32 %v683, %v687
    %v728 = vadd.f32 %v727, %v691
    %v729 = vadd.f32 %v728, %v695
    %v730 = vadd.f32 %v729, %v699
    %v731 = vadd.f32 %v730, %v703
    %v732 = vadd.f32 %v731, %v707
    %v733 = vadd.f32 %v732, %v711
    %v734 = vrot.slane %v733, 4
    %v735 = vadd.f32 %v733, %v734
    %v736 = vrot.slane %v735, 2
    %v737 = vadd.f32 %v735, %v736
    %v738 = vrot.slane %v737, 1
    %v739 = vadd.f32 %v737, %v738
    %v740 = vadd.f32 %v684, %v688
    %v741 = vadd.f32 %v740, %v692
    %v742 = vadd.f32 %v741, %v696
    %v743 = vadd.f32 %v742, %v700
    %v744 = vadd.f32 %v743, %v704
    %v745 = vadd.f32 %v744, %v708
    %v746 = vadd.f32 %v745, %v712
    %v747 = vrot.slane %v746, 4
    %v748 = vadd.f32 %v746, %v747
    %v749 = vrot.slane %v748, 2
    %v750 = vadd.f32 %v748, %v749
    %v751 = vrot.slane %v750, 1
    %v752 = vadd.f32 %v750, %v751
    %v753 = vadd.f32 %v685, %v689
    %v754 = vadd.f32 %v753, %v693
    %v755 = vadd.f32 %v754, %v697
    %v756 = vadd.f32 %v755, %v701
    %v757 = vadd.f32 %v756, %v705
    %v758 = vadd.f32 %v757, %v709
    %v759 = vadd.f32 %v758, %v713
    %v760 = vrot.slane %v759, 4
    %v761 = vadd.f32 %v759, %v760
    %v762 = vrot.slane %v761, 2
    %v763 = vadd.f32 %v761, %v762
    %v764 = vrot.slane %v763, 1
    %v765 = vadd.f32 %v763, %v764
    %v766 = vadd.f32 %v726, 1e-08
    %v767 = vadd.f32 %v739, 1e-08
    %v768 = vadd.f32 %v752, 1e-08
    %v769 = vadd.f32 %v765, 1e-08
    %v770 = vrsqrt.pop %v766
    %v771 = vrsqrt.pop %v767
    %v772 = vrsqrt.pop %v768
    %v773 = vrsqrt.pop %v769
    %v774 = vmul.f32 %v550, %v770
    %v775 = vmul.f32 %v551, %v771
    %v776 = vmul.f32 %v552, %v772
    %v777 = vmul.f32 %v553, %v773
    %v778 = vmul.f32 %v554, %v770
    %v779 = vmul.f32 %v555, %v771
    %v780 = vmul.f32 %v556, %v772
    %v781 = vmul.f32 %v557, %v773
    %v782 = vmul.f32 %v558, %v770
    %v783 = vmul.f32 %v559, %v771
    %v784 = vmul.f32 %v560, %v772
    %v785 = vmul.f32 %v561, %v773
    %v786 = vmul.f32 %v562, %v770
    %v787 = vmul.f32 %v563, %v771
    %v788 = vmul.f32 %v564, %v772
    %v789 = vmul.f32 %v565, %v773
    %v790 = vmul.f32 %v566, %v770
    %v791 = vmul.f32 %v567, %v771
    %v792 = vmul.f32 %v568, %v772
    %v793 = vmul.f32 %v569, %v773
    %v794 = vmul.f32 %v570, %v770
    %v795 = vmul.f32 %v571, %v771
    %v796 = vmul.f32 %v572, %v772
    %v797 = vmul.f32 %v573, %v773
    %v798 = vmul.f32 %v574, %v770
    %v799 = vmul.f32 %v575, %v771
    %v800 = vmul.f32 %v576, %v772
    %v801 = vmul.f32 %v577, %v773
    %v802 = vmul.f32 %v578, %v770
    %v803 = vmul.f32 %v579, %v771
    %v804 = vmul.f32 %v580, %v772
    %v805 = vmul.f32 %v581, %v773
    %v806 = vmul.f32 %v650, %v650
    %v807 = vmul.f32 %v651, %v651
    %v808 = vmul.f32 %v652, %v652
    %v809 = vmul.f32 %v653, %v653
    %v810 = vmul.f32 %v654, %v654
    %v811 = vmul.f32 %v655, %v655
    %v812 = vmul.f32 %v656, %v656
    %v813 = vmul.f32 %v657, %v657
    %v814 = vmul.f32 %v658, %v658
    %v815 = vmul.f32 %v659, %v659
    %v816 = vmul.f32 %v660, %v660
    %v817 = vmul.f32 %v661, %v661
    %v818 = vmul.f32 %v662, %v662
    %v819 = vmul.f32 %v663, %v663
    %v820 = vmul.f32 %v664, %v664
    %v821 = vmul.f32 %v665, %v665
    %v822 = vmul.f32 %v666, %v666
    %v823 = vmul.f32 %v667, %v667
    %v824 = vmul.f32 %v668, %v668
    %v825 = vmul.f32 %v669, %v669
    %v826 = vmul.f32 %v670, %v670
    %v827 = vmul.f32 %v671, %v671
    %v828 = vmul.f32 %v672, %v672
    %v829 = vmul.f32 %v673, %v673
    %v830 = vmul.f32 %v674, %v674
    %v831 = vmul.f32 %v675, %v675
    %v832 = vmul.f32 %v676, %v676
    %v833 = vmul.f32 %v677, %v677
    %v834 = vmul.f32 %v678, %v678
    %v835 = vmul.f32 %v679, %v679
    %v836 = vmul.f32 %v680, %v680
    %v837 = vmul.f32 %v681, %v681
    %v838 = vadd.f32 %v806, %v810
    %v839 = vadd.f32 %v838, %v814
    %v840 = vadd.f32 %v839, %v818
    %v841 = vadd.f32 %v840, %v822
    %v842 = vadd.f32 %v841, %v826
    %v843 = vadd.f32 %v842, %v830
    %v844 = vadd.f32 %v843, %v834
    %v845 = vrot.slane %v844, 4
    %v846 = vadd.f32 %v844, %v845
    %v847 = vrot.slane %v846, 2
    %v848 = vadd.f32 %v846, %v847
    %v849 = vrot.slane %v848, 1
    %v850 = vadd.f32 %v848, %v849
    %v851 = vadd.f32 %v807, %v811
    %v852 = vadd.f32 %v851, %v815
    %v853 = vadd.f32 %v852, %v819
    %v854 = vadd.f32 %v853, %v823
    %v855 = vadd.f32 %v854, %v827
    %v856 = vadd.f32 %v855, %v831
    %v857 = vadd.f32 %v856, %v835
    %v858 = vrot.slane %v857, 4
    %v859 = vadd.f32 %v857, %v858
    %v860 = vrot.slane %v859, 2
    %v861 = vadd.f32 %v859, %v860
    %v862 = vrot.slane %v861, 1
    %v863 = vadd.f32 %v861, %v862
    %v864 = vadd.f32 %v808, %v812
    %v865 = vadd.f32 %v864, %v816
    %v866 = vadd.f32 %v865, %v820
    %v867 = vadd.f32 %v866, %v824
    %v868 = vadd.f32 %v867, %v828
    %v869 = vadd.f32 %v868, %v832
    %v870 = vadd.f32 %v869, %v836
    %v871 = vrot.slane %v870, 4
    %v872 = vadd.f32 %v870, %v871
    %v873 = vrot.slane %v872, 2
    %v874 = vadd.f32 %v872, %v873
    %v875 = vrot.slane %v874, 1
    %v876 = vadd.f32 %v874, %v875
    %v877 = vadd.f32 %v809, %v813
    %v878 = vadd.f32 %v877, %v817
    %v879 = vadd.f32 %v878, %v821
    %v880 = vadd.f32 %v879, %v825
    %v881 = vadd.f32 %v880, %v829
    %v882 = vadd.f32 %v881, %v833
    %v883 = vadd.f32 %v882, %v837
    %v884 = vrot.slane %v883, 4
    %v885 = vadd.f32 %v883, %v884
    %v886 = vrot.slane %v885, 2
    %v887 = vadd.f32 %v885, %v886
    %v888 = vrot.slane %v887, 1
    %v889 = vadd.f32 %v887, %v888
    %v890 = vadd.f32 %v850, 1e-08
    %v891 = vadd.f32 %v863, 1e-08
    %v892 = vadd.f32 %v876, 1e-08
    %v893 = vadd.f32 %v889, 1e-08
    %v894 = vrsqrt.pop %v890
    %v895 = vrsqrt.pop %v891
    %v896 = vrsqrt.pop %v892
    %v897 = vrsqrt.pop %v893
    %v898 = vmul.f32 %v650, %v894
    %v899 = vmul.f32 %v651, %v895
    %v900 = vmul.f32 %v652, %v896
    %v901 = vmul.f32 %v653, %v897
    %v902 = vmul.f32 %v654, %v894
    %v903 = vmul.f32 %v655, %v895
    %v904 = vmul.f32 %v656, %v896
    %v905 = vmul.f32 %v657, %v897
    %v906 = vmul.f32 %v658, %v894
    %v907 = vmul.f32 %v659, %v895
    %v908 = vmul.f32 %v660, %v896
    %v909 = vmul.f32 %v661, %v897
    %v910 = vmul.f32 %v662, %v894
    %v911 = vmul.f32 %v663, %v895
    %v912 = vmul.f32 %v664, %v896
    %v913 = vmul.f32 %v665, %v897
    %v914 = vmul.f32 %v666, %v894
    %v915 = vmul.f32 %v667, %v895
    %v916 = vmul.f32 %v668, %v896
    %v917 = vmul.f32 %v669, %v897
    %v918 = vmul.f32 %v670, %v894
    %v919 = vmul.f32 %v671, %v895
    %v920 = vmul.f32 %v672, %v896
    %v921 = vmul.f32 %v673, %v897
    %v922 = vmul.f32 %v674, %v894
    %v923 = vmul.f32 %v675, %v895
    %v924 = vmul.f32 %v676, %v896
    %v925 = vmul.f32 %v677, %v897
    %v926 = vmul.f32 %v678, %v894
    %v927 = vmul.f32 %v679, %v895
    %v928 = vmul.f32 %v680, %v896
    %v929 = vmul.f32 %v681, %v897
    %v930 = vsub.f32 %v774, %v898
    %v931 = vsub.f32 %v775, %v899
    %v932 = vsub.f32 %v776, %v900
    %v933 = vsub.f32 %v777, %v901
    %v934 = vsub.f32 %v778, %v902
    %v935 = vsub.f32 %v779, %v903
    %v936 = vsub.f32 %v780, %v904
    %v937 = vsub.f32 %v781, %v905
    %v938 = vsub.f32 %v782, %v906
    %v939 = vsub.f32 %v783, %v907
    %v940 = vsub.f32 %v784, %v908
    %v941 = vsub.f32 %v785, %v909
    %v942 = vsub.f32 %v786, %v910
    %v943 = vsub.f32 %v787, %v911
    %v944 = vsub.f32 %v788, %v912
    %v945 = vsub.f32 %v789, %v913
    %v946 = vsub.f32 %v790, %v914
    %v947 = vsub.f32 %v791, %v915
    %v948 = vsub.f32 %v792, %v916
    %v949 = vsub.f32 %v793, %v917
    %v950 = vsub.f32 %v794, %v918
    %v951 = vsub.f32 %v795, %v919
    %v952 = vsub.f32 %v796, %v920
    %v953 = vsub.f32 %v797, %v921
    %v954 = vsub.f32 %v798, %v922
    %v955 = vsub.f32 %v799, %v923
    %v956 = vsub.f32 %v800, %v924
    %v957 = vsub.f32 %v801, %v925
    %v958 = vsub.f32 %v802, %v926
    %v959 = vsub.f32 %v803, %v927
    %v960 = vsub.f32 %v804, %v928
    %v961 = vsub.f32 %v805, %v929
    %v962 = vmul.f32 %v930, %v930
    %v963 = vmul.f32 %v931, %v931
    %v964 = vmul.f32 %v932, %v932
    %v965 = vmul.f32 %v933, %v933
    %v966 = vmul.f32 %v934, %v934
    %v967 = vmul.f32 %v935, %v935
    %v968 = vmul.f32 %v936, %v936
    %v969 = vmul.f32 %v937, %v937
    %v970 = vmul.f32 %v938, %v938
    %v971 = vmul.f32 %v939, %v939
    %v972 = vmul.f32 %v940, %v940
    %v973 = vmul.f32 %v941, %v941
    %v974 = vmul.f32 %v942, %v942
    %v975 = vmul.f32 %v943, %v943
    %v976 = vmul.f32 %v944, %v944
    %v977 = vmul.f32 %v945, %v945
    %v978 = vmul.f32 %v946, %v946
    %v979 = vmul.f32 %v947, %v947
    %v980 = vmul.f32 %v948, %v948
    %v981 = vmul.f32 %v949, %v949
    %v982 = vmul.f32 %v950, %v950
    %v983 = vmul.f32 %v951, %v951
    %v984 = vmul.f32 %v952, %v952
    %v985 = vmul.f32 %v953, %v953
    %v986 = vmul.f32 %v954, %v954
    %v987 = vmul.f32 %v955, %v955
    %v988 = vmul.f32 %v956, %v956
    %v989 = vmul.f32 %v957, %v957
    %v990 = vmul.f32 %v958, %v958
    %v991 = vmul.f32 %v959, %v959
    %v992 = vmul.f32 %v960, %v960
    %v993 = vmul.f32 %v961, %v961
    %v994 = vadd.f32 %v962, %v963
    %v995 = vadd.f32 %v994, %v964
    %v996 = vadd.f32 %v995, %v965
    %997 = vadd.xlane.f32.xlu0 %v996
    %v998 = vpop.xlane.xlu0 %997
    %v999 = vadd.f32 %v966, %v967
    %v1000 = vadd.f32 %v999, %v968
    %v1001 = vadd.f32 %v1000, %v969
    %1002 = vadd.xlane.f32.xlu0 %v1001
    %v1003 = vpop.xlane.xlu0 %1002
    %v1004 = vadd.f32 %v970, %v971
    %v1005 = vadd.f32 %v1004, %v972
    %v1006 = vadd.f32 %v1005, %v973
    %1007 = vadd.xlane.f32.xlu0 %v1006
    %v1008 = vpop.xlane.xlu0 %1007
    %v1009 = vadd.f32 %v974, %v975
    %v1010 = vadd.f32 %v1009, %v976
    %v1011 = vadd.f32 %v1010, %v977
    %1012 = vadd.xlane.f32.xlu0 %v1011
    %v1013 = vpop.xlane.xlu0 %1012
    %v1014 = vadd.f32 %v978, %v979
    %v1015 = vadd.f32 %v1014, %v980
    %v1016 = vadd.f32 %v1015, %v981
    %1017 = vadd.xlane.f32.xlu0 %v1016
    %v1018 = vpop.xlane.xlu0 %1017
    %v1019 = vadd.f32 %v982, %v983
    %v1020 = vadd.f32 %v1019, %v984
    %v1021 = vadd.f32 %v1020, %v985
    %1022 = vadd.xlane.f32.xlu0 %v1021
    %v1023 = vpop.xlane.xlu0 %1022
    %v1024 = vadd.f32 %v986, %v987
    %v1025 = vadd.f32 %v1024, %v988
    %v1026 = vadd.f32 %v1025, %v989
    %1027 = vadd.xlane.f32.xlu0 %v1026
    %v1028 = vpop.xlane.xlu0 %1027
    %v1029 = vadd.f32 %v990, %v991
    %v1030 = vadd.f32 %v1029, %v992
    %v1031 = vadd.f32 %v1030, %v993
    %1032 = vadd.xlane.f32.xlu0 %v1031
    %v1033 = vpop.xlane.xlu0 %1032
    %v1034 = vld [vmem:[%s3] sm:$0xff]
    %v1035 = vld [vmem:[%s3 + $0x8] sm:$0xff]
    %v1036 = vld [vmem:[%s3 + $0x10] sm:$0xff]
    %v1037 = vld [vmem:[%s3 + $0x18] sm:$0xff]
    %v1038 = vld [vmem:[%s3 + $0x20] sm:$0xff]
    %v1039 = vld [vmem:[%s3 + $0x28] sm:$0xff]
    %v1040 = vld [vmem:[%s3 + $0x30] sm:$0xff]
    %v1041 = vld [vmem:[%s3 + $0x38] sm:$0xff]
    %v1042 = vmul.f32 %v998, %v1034
    %v1043 = vmul.f32 %v1003, %v1035
    %v1044 = vmul.f32 %v1008, %v1036
    %v1045 = vmul.f32 %v1013, %v1037
    %v1046 = vmul.f32 %v1018, %v1038
    %v1047 = vmul.f32 %v1023, %v1039
    %v1048 = vmul.f32 %v1028, %v1040
    %v1049 = vmul.f32 %v1033, %v1041
    %vm1050 = vcmask 7168
    %v1051 = vsel %vm1050, %v1042, 0.0
    %v1052 = vsel %vm1050, %v1043, 0.0
    %v1053 = vadd.f32 %v1051, %v1052
    %v1054 = vsel %vm1050, %v1044, 0.0
    %v1055 = vadd.f32 %v1053, %v1054
    %v1056 = vsel %vm1050, %v1045, 0.0
    %v1057 = vadd.f32 %v1055, %v1056
    %v1058 = vsel %vm1050, %v1046, 0.0
    %v1059 = vadd.f32 %v1057, %v1058
    %v1060 = vsel %vm1050, %v1047, 0.0
    %v1061 = vadd.f32 %v1059, %v1060
    %v1062 = vsel %vm1050, %v1048, 0.0
    %v1063 = vadd.f32 %v1061, %v1062
    %v1064 = vsel %vm1050, %v1049, 0.0
    %v1065 = vadd.f32 %v1063, %v1064
    %1066 = vadd.xlane.f32.xlu0 %v1065
    %v1067 = vpop.xlane.xlu0 %1066
    %v1068 = vrot.slane %v1067, 4
    %v1069 = vadd.f32 %v1067, %v1068
    %v1070 = vrot.slane %v1069, 2
    %v1071 = vadd.f32 %v1069, %v1070
    %v1072 = vrot.slane %v1071, 1
    %v1073 = vadd.f32 %v1071, %v1072
    %s1074 = vtos %v1073
    %s1075 = smul.f32 %s1074, 0.001953125
    %v1076 = vstv %s1075
    %vm1077 = vcmask 0
    %1078 = vst.msk [vmem:[#allocation2] sm:$0x1] %vm1077, %v1076
    // Predicated region
    $region18: #{specious_loss.2} parent=1 // pred_check
      _
    $region19: #{specious_loss.2} parent=1 // pred_check_branch
      %1080 = sbr.rel (0) target = $region21
    $region20: #{specious_loss.2} parent=1 // pred_region
      %s1082 = ssub.s32 16, 16
      %1083 = vsyncadd [#allocation3], %s1082
      %s1085 = sshll.u32 [#allocation2], 4
      %s1086 = int_to_ptr.vmem [resolvable:$true] %s1085
      %1088 = dma.vmem_to_hbm [thread:$0]  %s1086, 16, %s4, [#allocation3]
    $region21: #{specious_loss.2} parent=1 // pred_fallthru
      _
    // Predicated region
    $region22: #{specious_loss.2} parent=1 // pred_check
      _
    $region23: #{specious_loss.2} parent=1 // pred_check_branch
      %1090 = sbr.rel (0) target = $region25
    $region24: #{specious_loss.2} parent=1 // pred_region
      %1091 = dma.done [#allocation3], 16
    $region25: #{specious_loss.2} parent=1 // pred_fallthru
      _
    %1092 = vsyncpa [#allocation3], 1

// kernel: specious_loss.3
$region0: #{specious_loss.3}
  #allocation0 [shape = 'u32[]', space=smem, size = 0x4, offset = 0x4, fixed_abs, tag = 'smem constant byte address 0x4 - core index']
  #allocation1 [shape = 'u32[144,128]{1,0:T(1,128)}', space=vmem, size = 0x12000, scoped, tag = 'internal scratch']
  #allocation2 [shape = 'f32[2,512]{1,0:T(2,128)}', space=vmem, size = 0x1000, scoped, tag = 'scratch operand']
  %s0 = inlined_call_operand.vmem [shape: f32[2,768], index: 0, kind: input, shape index: {}]
  %s1 = inlined_call_operand.vmem [shape: f32[2,768], index: 1, kind: input, shape index: {}]
  %s2 = inlined_call_operand.hbm [shape: bf16[768,2560], index: 2, kind: input, shape index: {}]
  %s3 = inlined_call_operand.vmem [shape: f32[5,8,128], index: 3, kind: output, shape index: {}]
  %s4 = sld [smem:[#allocation0]]
  $region57: #{specious_loss.3} parent=0
    _
  %s6 = ssub.s32 1, %s4
  %s7 = scalar_select 0, %s6, %s4
  $region1: #{specious_loss.3} parent=0
    #allocation3 [shape = 'u8[1572864]{0}', space=vmem, size = 0x180000, scoped, tag = 'input window, operand 2']
    #allocation4 [shape = 's32[2]{0}', space=sflag, size = 0x8, scoped, tag = 'scoped memory for specious_loss.3']
    %8 = vsyncpa [#allocation4], 0
    %s9 = scalar_lea.sflag [#allocation4], 1
    %10 = vsyncpa %s9, 0
    loop: start=0, step=1, limit=7
    $region2: #{specious_loss.3} parent=1 // loop_pre_header
      _
    $region3: #{specious_loss.3} parent=1 // loop_header
      %s12 = sphi 0, %s16
      %p13 = scmp.ge.s32.totalorder %s12, 7
      %s19 = sphi 0, %s31
      %s20 = sphi 0, %s27
      %s21 = sphi 0, %s19
      %s22 = sphi 0, %s20
      %s23 = sphi 0, %s21
      %s24 = sphi 0, %s22
      %s34 = sphi 0, %s36
      %s37 = sphi 0, %s34
      %s38 = sphi 0, %s37
      %s54 = sphi 0, %s38
      %s60 = sphi 0, %s62
      %s63 = sphi 0, %s60
      %s64 = sphi 0, %s63
      %s80 = sphi 0, %s64
      %s88 = sphi 0, %s90
      %s91 = sphi 0, %s88
      %s92 = sphi 0, %s91
      %s108 = sphi 0, %s92
      %s114 = sphi 0, %s116
      %s117 = sphi 0, %s114
      %s118 = sphi 0, %s117
      %s134 = sphi 0, %s118
    $region4: #{specious_loss.3} parent=1 // loop_header_branch
      %15 = sbr.rel (%p13) target = $region8
    $region5: #{specious_loss.3} parent=1 // loop_body
      %s17 = ssub.s32 %s12, 1
      %s18 = ssub.s32 %s12, 2
      %s25 = sadd.s32 1, %s20
      %p26 = scmp.ge.s32.totalorder %s25, 1
      %s27 = scalar_select %p26, 0, %s25
      %s28 = sadd.s32 1, %s19
      %s29 = scalar_select %p26, %s28, %s19
      %p30 = scmp.ge.s32.totalorder %s29, 5
      %s31 = scalar_select %p30, 0, %s29
      %s32 = ssub.s32 %s20, %s27
      %p33 = scmp.eq.s32.totalorder %s32, 0
      %s35 = sadd.s32 %s34, 1
      %s36 = scalar_select %p33, %s34, %s35
      %p39 = pneg %p33
      %p40 = scmp.eq.s32.totalorder %s12, 4
      %p41 = por %p39, %p40
      %p42 = scmp.ne.s32.totalorder %s34, %s37
      %p43 = scmp.eq.s32.totalorder %s12, 0
      %p44 = por %p42, %p43
      %p45 = scmp.ne.s32.totalorder %s34, %s37
      %p46 = scmp.eq.s32.totalorder %s17, 4
      %p47 = por %p45, %p46
      %p48 = scmp.ne.s32.totalorder %s37, %s38
      %p49 = scmp.eq.s32.totalorder %s17, 0
      %p50 = por %p48, %p49
      %p51 = scmp.ne.s32.totalorder %s37, %s38
      %p52 = scmp.eq.s32.totalorder %s18, 4
      %p53 = por %p51, %p52
      %p55 = scmp.ne.s32.totalorder %s38, %s54
      %p56 = scmp.eq.s32.totalorder %s18, 0
      %p57 = por %p55, %p56
      %s58 = ssub.s32 %s20, %s27
      %p59 = scmp.eq.s32.totalorder %s58, 0
      %s61 = sadd.s32 %s60, 1
      %s62 = scalar_select %p59, %s60, %s61
      %p65 = pneg %p59
      %p66 = scmp.eq.s32.totalorder %s12, 4
      %p67 = por %p65, %p66
      %p68 = scmp.ne.s32.totalorder %s60, %s63
      %p69 = scmp.eq.s32.totalorder %s12, 0
      %p70 = por %p68, %p69
      %p71 = scmp.ne.s32.totalorder %s60, %s63
      %p72 = scmp.eq.s32.totalorder %s17, 4
      %p73 = por %p71, %p72
      %p74 = scmp.ne.s32.totalorder %s63, %s64
      %p75 = scmp.eq.s32.totalorder %s17, 0
      %p76 = por %p74, %p75
      %p77 = scmp.ne.s32.totalorder %s63, %s64
      %p78 = scmp.eq.s32.totalorder %s18, 4
      %p79 = por %p77, %p78
      %p81 = scmp.ne.s32.totalorder %s64, %s80
      %p82 = scmp.eq.s32.totalorder %s18, 0
      %p83 = por %p81, %p82
      %s84 = ssub.s32 %s20, %s27
      %s85 = ssub.s32 %s19, %s31
      %s86 = sor.u32 %s84, %s85
      %p87 = scmp.eq.s32.totalorder %s86, 0
      %s89 = sadd.s32 %s88, 1
      %s90 = scalar_select %p87, %s88, %s89
      %p93 = pneg %p87
      %p94 = scmp.eq.s32.totalorder %s12, 4
      %p95 = por %p93, %p94
      %p96 = scmp.ne.s32.totalorder %s88, %s91
      %p97 = scmp.eq.s32.totalorder %s12, 0
      %p98 = por %p96, %p97
      %p99 = scmp.ne.s32.totalorder %s88, %s91
      %p100 = scmp.eq.s32.totalorder %s17, 4
      %p101 = por %p99, %p100
      %p102 = scmp.ne.s32.totalorder %s91, %s92
      %p103 = scmp.eq.s32.totalorder %s17, 0
      %p104 = por %p102, %p103
      %p105 = scmp.ne.s32.totalorder %s91, %s92
      %p106 = scmp.eq.s32.totalorder %s18, 4
      %p107 = por %p105, %p106
      %p109 = scmp.ne.s32.totalorder %s92, %s108
      %p110 = scmp.eq.s32.totalorder %s18, 0
      %p111 = por %p109, %p110
      %s112 = ssub.s32 %s19, %s31
      %p113 = scmp.eq.s32.totalorder %s112, 0
      %s115 = sadd.s32 %s114, 1
      %s116 = scalar_select %p113, %s114, %s115
      %p119 = pneg %p113
      %p120 = scmp.eq.s32.totalorder %s12, 4
      %p121 = por %p119, %p120
      %p122 = scmp.ne.s32.totalorder %s114, %s117
      %p123 = scmp.eq.s32.totalorder %s12, 0
      %p124 = por %p122, %p123
      %p125 = scmp.ne.s32.totalorder %s114, %s117
      %p126 = scmp.eq.s32.totalorder %s17, 4
      %p127 = por %p125, %p126
      %p128 = scmp.ne.s32.totalorder %s117, %s118
      %p129 = scmp.eq.s32.totalorder %s17, 0
      %p130 = por %p128, %p129
      %p131 = scmp.ne.s32.totalorder %s117, %s118
      %p132 = scmp.eq.s32.totalorder %s18, 4
      %p133 = por %p131, %p132
      %p135 = scmp.ne.s32.totalorder %s118, %s134
      %p136 = scmp.eq.s32.totalorder %s18, 0
      %p137 = por %p135, %p136
      %p138 = scmp.le.s32.totalorder 1, %s12
      %p139 = scmp.lt.s32.totalorder %s12, 6
      %p140 = pnand %p138, %p139
      %p141 = pneg %p140
      // Predicated region
      $region9: #{specious_loss.3} parent=5 // pred_check
        _
      $region10: #{specious_loss.3} parent=5 // pred_check_branch
        %143 = sbr.rel (%p140) target = $region12
      $region11: #{specious_loss.3} parent=5 // pred_region
        %s144 = ssub.s32 %s12, 1
        // Predicated region
        $region13: #{specious_loss.3} parent=11 // pred_check
          %p145 = pneg %p50
        $region14: #{specious_loss.3} parent=11 // pred_check_branch
          %147 = sbr.rel (%p145) target = $region16
        $region15: #{specious_loss.3} parent=11 // pred_region
          %s148 = smul.u32 6, %s22
          %p149 = scmp.lt.s32.totalorder %s148, 5
          %s150 = scalar_select %p149, %s148, 5
          %s151 = smul.addr %s150, 2
          %s152 = scalar_lea.vmem %s0, %s151
          %s153 = smul.u32 6, %s22
        $region16: #{specious_loss.3} parent=11 // pred_fallthru
          _
        // Predicated region
        $region17: #{specious_loss.3} parent=11 // pred_check
          %p154 = pneg %p76
        $region18: #{specious_loss.3} parent=11 // pred_check_branch
          %156 = sbr.rel (%p154) target = $region20
        $region19: #{specious_loss.3} parent=11 // pred_region
          %s157 = smul.u32 6, %s22
          %p158 = scmp.lt.s32.totalorder %s157, 5
          %s159 = scalar_select %p158, %s157, 5
          %s160 = smul.addr %s159, 2
          %s161 = scalar_lea.vmem %s1, %s160
          %s162 = smul.u32 6, %s22
        $region20: #{specious_loss.3} parent=11 // pred_fallthru
          _
      $region12: #{specious_loss.3} parent=5 // pred_fallthru
        _
      %p163 = scmp.lt.s32.totalorder %s12, 5
      // Predicated region
      $region21: #{specious_loss.3} parent=5 // pred_check
        %p164 = pneg %p163
      $region22: #{specious_loss.3} parent=5 // pred_check_branch
        %166 = sbr.rel (%p164) target = $region24
      $region23: #{specious_loss.3} parent=5 // pred_region
        // Predicated region
        $region25: #{specious_loss.3} parent=23 // pred_check
          %p167 = pneg %p98
        $region26: #{specious_loss.3} parent=23 // pred_check_branch
          %169 = sbr.rel (%p167) target = $region28
        $region27: #{specious_loss.3} parent=23 // pred_region
          %s170 = sand.u32 %s88, 1
          %s171 = scalar_lea.sflag [#allocation4], %s170
          %s172 = sand.u32 %s88, 1
          %s173 = smul.addr %s172, 1536
          %s174 = scalar_lea.vmem [#allocation3], %s173
          %s175 = smul.u32 96, %s20
          %s176 = smul.u32 4, %s19
          %s178 = ssub.s32 24576, 24576
          %179 = vsyncadd %s171, %s178
          %s180 = smul.addr %s175, 20
          %s181 = sadd.s32 %s176, %s180
          %s182 = smul.addr %s181, 64
          %s183 = scalar_lea.hbm %s2, %s182
          %s184 = sshll.u32 %s174, 4
          %s185 = int_to_ptr.vmem [resolvable:$true] %s184
          %190 = dma.hbm_to_vmem [thread:$0]  %s183, 24576, %s185, %s171, 1280, 256, 16
        $region28: #{specious_loss.3} parent=23 // pred_fallthru
          _
      $region24: #{specious_loss.3} parent=5 // pred_fallthru
        _
      %p191 = scmp.le.s32.totalorder 1, %s12
      %p192 = scmp.lt.s32.totalorder %s12, 6
      %p193 = pnand %p191, %p192
      %p194 = pneg %p193
      // Predicated region
      $region29: #{specious_loss.3} parent=5 // pred_check
        _
      $region30: #{specious_loss.3} parent=5 // pred_check_branch
        %196 = sbr.rel (%p193) target = $region32
      $region31: #{specious_loss.3} parent=5 // pred_region
        %s197 = ssub.s32 %s12, 1
        %s198 = sand.u32 %s91, 1
        %s199 = scalar_lea.sflag [#allocation4], %s198
        %s200 = sand.u32 %s91, 1
        %s201 = smul.addr %s200, 1536
        %s202 = scalar_lea.vmem [#allocation3], %s201
        // Predicated region
        $region33: #{specious_loss.3} parent=31 // pred_check
          %p203 = pneg %p104
        $region34: #{specious_loss.3} parent=31 // pred_check_branch
          %205 = sbr.rel (%p203) target = $region36
        $region35: #{specious_loss.3} parent=31 // pred_region
          %206 = dma.done %s199, 24576
        $region36: #{specious_loss.3} parent=31 // pred_fallthru
          _
        %s207 = smul.u32 6, %s22
        %p208 = scmp.lt.s32.totalorder %s207, 5
        %s209 = scalar_select %p208, %s207, 5
        %s210 = smul.addr %s209, 2
        %s211 = scalar_lea.vmem %s0, %s210
        %p212 = pneg %p50
        %p213 = pneg %p47
        %s214 = smul.u32 6, %s22
        %p215 = scmp.lt.s32.totalorder %s214, 5
        %s216 = scalar_select %p215, %s214, 5
        %s217 = smul.addr %s216, 2
        %s218 = scalar_lea.vmem %s1, %s217
        %p219 = pneg %p76
        %p220 = pneg %p73
        %s221 = sand.u32 %s91, 1
        %s222 = scalar_lea.sflag [#allocation4], %s221
        %s223 = sand.u32 %s91, 1
        %s224 = smul.addr %s223, 1536
        %s225 = scalar_lea.vmem [#allocation3], %s224
        %p226 = pneg %p104
        %p227 = pneg %p101
        %p228 = pneg %p130
        %p229 = pneg %p127
        %p230 = scmp.lt.s32.totalorder %s21, 4
        %s231 = scalar_select %p230, %s21, 4
        %s232 = smul.addr %s231, 8
        %s233 = scalar_lea.vmem %s3, %s232
        %s234 = smul.u32 6, %s22
        %p235 = scmp.lt.s32.totalorder %s234, 5
        %s236 = scalar_select %p235, %s234, 5
        %s237 = smul.addr %s236, 2
        %s238 = scalar_lea.vmem %s0, %s237
        %s239 = smul.u32 6, %s22
        %s240 = smul.u32 6, %s22
        %p241 = scmp.lt.s32.totalorder %s240, 5
        %s242 = scalar_select %p241, %s240, 5
        %s243 = smul.addr %s242, 2
        %s244 = scalar_lea.vmem %s1, %s243
        %s245 = smul.u32 6, %s22
        %s246 = smul.u32 96, %s22
        %s247 = smul.u32 4, %s21
        %p248 = scmp.lt.s32.totalorder %s21, 4
        %s249 = scalar_select %p248, %s21, 4
        %s250 = smul.addr %s249, 8
        %s251 = scalar_lea.vmem %s3, %s250
        %p252 = scmp.eq.s32.totalorder %s22, 0
        // Predicated region
        $region37: #{specious_loss.3} parent=31 // pred_check
          %p253 = pneg %p252
        $region38: #{specious_loss.3} parent=31 // pred_check_branch
          %255 = sbr.rel (%p253) target = $region40
        $region39: #{specious_loss.3} parent=31 // pred_region
          %256 = vst [vmem:[#allocation2] sm:$0xff] 0.0
        $region40: #{specious_loss.3} parent=31 // pred_fallthru
          _
        %v257 = vld [vmem:[%s238] sm:$0xff]
        %v258 = vld [vmem:[%s238 + $0x8] sm:$0xf]
        %v259 = vld [vmem:[%s244] sm:$0xff]
        %v260 = vld [vmem:[%s244 + $0x8] sm:$0xf]
        %v261 = vsub.f32 %v257, %v259
        %v262 = vsub.f32 %v258, %v260
        %v265 = vcombine.high %v261, %v261
        %v267 = vunpack.c.l.s4 1983009808
        %v268 = vunpack.c.0.s8 %v267
        %v269 = vlaneseq
        %v270 = vshrl.u32 %v269, 7
        %v271 = vsub.s32 %v268, %v270
        %v272 = vrot.slane %v261, %v271
        %v274 = vunpack.c.l.s4 1983009808
        %v275 = vunpack.c.0.s8 %v274
        %v276 = vlaneseq
        %v277 = vshrl.u32 %v276, 7
        %v278 = vsub.s32 %v275, %v277
        %v279 = vrot.slane %v265, %v278
        %v280 = vcombine.high %v272, %v272
        %v281 = vcombine.high %v279, %v279
        %v283 = vunpack.c.l.s4 1983009808
        %v284 = vunpack.c.0.s8 %v283
        %v285 = vlaneseq
        %v286 = vshrl.u32 %v285, 7
        %v287 = vsub.s32 %v284, %v286
        %v288 = vrot.slane %v262, %v287
        %v289 = vcombine.high %v288, %v288
        %v296 = vpack.c.bf16 %v272, %v272
        %v297 = vpack.c.bf16 %v280, %v280
        %v298 = vpack.c.bf16 %v279, %v279
        %v299 = vpack.c.bf16 %v281, %v281
        %v300 = vpack.c.bf16 %v288, %v288
        %v301 = vpack.c.bf16 %v289, %v289
        %v302 = vld [vmem:[#allocation2] sm:$0xff]
        %v303 = vld [vmem:[%s202] sm:$0xff]
        %v304 = vld [vmem:[%s202 + $0x8] sm:$0xff]
        %v305 = vld [vmem:[%s202 + $0x10] sm:$0xff]
        %v306 = vld [vmem:[%s202 + $0x18] sm:$0xff]
        %v307 = vld [vmem:[%s202 + $0x20] sm:$0xff]
        %v308 = vld [vmem:[%s202 + $0x28] sm:$0xff]
        %v309 = vld [vmem:[%s202 + $0x30] sm:$0xff]
        %v310 = vld [vmem:[%s202 + $0x38] sm:$0xff]
        %v311 = vld [vmem:[%s202 + $0x40] sm:$0xff]
        %v312 = vld [vmem:[%s202 + $0x48] sm:$0xff]
        %v313 = vld [vmem:[%s202 + $0x50] sm:$0xff]
        %v314 = vld [vmem:[%s202 + $0x58] sm:$0xff]
        %v315 = vld [vmem:[%s202 + $0x60] sm:$0xff]
        %v316 = vld [vmem:[%s202 + $0x68] sm:$0xff]
        %v317 = vld [vmem:[%s202 + $0x70] sm:$0xff]
        %v318 = vld [vmem:[%s202 + $0x78] sm:$0xff]
        %v319 = vld [vmem:[%s202 + $0x80] sm:$0xff]
        %v320 = vld [vmem:[%s202 + $0x88] sm:$0xff]
        %v321 = vld [vmem:[%s202 + $0x90] sm:$0xff]
        %v322 = vld [vmem:[%s202 + $0x98] sm:$0xff]
        %v323 = vld [vmem:[%s202 + $0xa0] sm:$0xff]
        %v324 = vld [vmem:[%s202 + $0xa8] sm:$0xff]
        %v325 = vld [vmem:[%s202 + $0xb0] sm:$0xff]
        %v326 = vld [vmem:[%s202 + $0xb8] sm:$0xff]
        %v327 = vld [vmem:[%s202 + $0xc0] sm:$0xff]
        %v328 = vld [vmem:[%s202 + $0xc8] sm:$0xff]
        %v329 = vld [vmem:[%s202 + $0xd0] sm:$0xff]
        %v330 = vld [vmem:[%s202 + $0xd8] sm:$0xff]
        %v331 = vld [vmem:[%s202 + $0xe0] sm:$0xff]
        %v332 = vld [vmem:[%s202 + $0xe8] sm:$0xff]
        %v333 = vld [vmem:[%s202 + $0xf0] sm:$0xff]
        %v334 = vld [vmem:[%s202 + $0xf8] sm:$0xff]
        %v335 = vld [vmem:[%s202 + $0x100] sm:$0xff]
        %v336 = vld [vmem:[%s202 + $0x108] sm:$0xff]
        %v337 = vld [vmem:[%s202 + $0x110] sm:$0xff]
        %v338 = vld [vmem:[%s202 + $0x118] sm:$0xff]
        %v339 = vld [vmem:[%s202 + $0x120] sm:$0xff]
        %v340 = vld [vmem:[%s202 + $0x128] sm:$0xff]
        %v341 = vld [vmem:[%s202 + $0x130] sm:$0xff]
        %v342 = vld [vmem:[%s202 + $0x138] sm:$0xff]
        %v343 = vld [vmem:[%s202 + $0x140] sm:$0xff]
        %v344 = vld [vmem:[%s202 + $0x148] sm:$0xff]
        %v345 = vld [vmem:[%s202 + $0x150] sm:$0xff]
        %v346 = vld [vmem:[%s202 + $0x158] sm:$0xff]
        %v347 = vld [vmem:[%s202 + $0x160] sm:$0xff]
        %v348 = vld [vmem:[%s202 + $0x168] sm:$0xff]
        %v349 = vld [vmem:[%s202 + $0x170] sm:$0xff]
        %v350 = vld [vmem:[%s202 + $0x178] sm:$0xff]
        %v351 = vld [vmem:[%s202 + $0x180] sm:$0xff]
        %v352 = vld [vmem:[%s202 + $0x188] sm:$0xff]
        %v353 = vld [vmem:[%s202 + $0x190] sm:$0xff]
        %v354 = vld [vmem:[%s202 + $0x198] sm:$0xff]
        %v355 = vld [vmem:[%s202 + $0x1a0] sm:$0xff]
        %v356 = vld [vmem:[%s202 + $0x1a8] sm:$0xff]
        %v357 = vld [vmem:[%s202 + $0x1b0] sm:$0xff]
        %v358 = vld [vmem:[%s202 + $0x1b8] sm:$0xff]
        %v359 = vld [vmem:[%s202 + $0x1c0] sm:$0xff]
        %v360 = vld [vmem:[%s202 + $0x1c8] sm:$0xff]
        %v361 = vld [vmem:[%s202 + $0x1d0] sm:$0xff]
        %v362 = vld [vmem:[%s202 + $0x1d8] sm:$0xff]
        %v363 = vld [vmem:[%s202 + $0x1e0] sm:$0xff]
        %v364 = vld [vmem:[%s202 + $0x1e8] sm:$0xff]
        %v365 = vld [vmem:[%s202 + $0x1f0] sm:$0xff]
        %v366 = vld [vmem:[%s202 + $0x1f8] sm:$0xff]
        %v367 = vld [vmem:[%s202 + $0x200] sm:$0xff]
        %v368 = vld [vmem:[%s202 + $0x208] sm:$0xff]
        %v369 = vld [vmem:[%s202 + $0x210] sm:$0xff]
        %v370 = vld [vmem:[%s202 + $0x218] sm:$0xff]
        %v371 = vld [vmem:[%s202 + $0x220] sm:$0xff]
        %v372 = vld [vmem:[%s202 + $0x228] sm:$0xff]
        %v373 = vld [vmem:[%s202 + $0x230] sm:$0xff]
        %v374 = vld [vmem:[%s202 + $0x238] sm:$0xff]
        %v375 = vld [vmem:[%s202 + $0x240] sm:$0xff]
        %v376 = vld [vmem:[%s202 + $0x248] sm:$0xff]
        %v377 = vld [vmem:[%s202 + $0x250] sm:$0xff]
        %v378 = vld [vmem:[%s202 + $0x258] sm:$0xff]
        %v379 = vld [vmem:[%s202 + $0x260] sm:$0xff]
        %v380 = vld [vmem:[%s202 + $0x268] sm:$0xff]
        %v381 = vld [vmem:[%s202 + $0x270] sm:$0xff]
        %v382 = vld [vmem:[%s202 + $0x278] sm:$0xff]
        %v383 = vld [vmem:[%s202 + $0x280] sm:$0xff]
        %v384 = vld [vmem:[%s202 + $0x288] sm:$0xff]
        %v385 = vld [vmem:[%s202 + $0x290] sm:$0xff]
        %v386 = vld [vmem:[%s202 + $0x298] sm:$0xff]
        %v387 = vld [vmem:[%s202 + $0x2a0] sm:$0xff]
        %v388 = vld [vmem:[%s202 + $0x2a8] sm:$0xff]
        %v389 = vld [vmem:[%s202 + $0x2b0] sm:$0xff]
        %v390 = vld [vmem:[%s202 + $0x2b8] sm:$0xff]
        %v391 = vld [vmem:[%s202 + $0x2c0] sm:$0xff]
        %v392 = vld [vmem:[%s202 + $0x2c8] sm:$0xff]
        %v393 = vld [vmem:[%s202 + $0x2d0] sm:$0xff]
        %v394 = vld [vmem:[%s202 + $0x2d8] sm:$0xff]
        %v395 = vld [vmem:[%s202 + $0x2e0] sm:$0xff]
        %v396 = vld [vmem:[%s202 + $0x2e8] sm:$0xff]
        %v397 = vld [vmem:[%s202 + $0x2f0] sm:$0xff]
        %v398 = vld [vmem:[%s202 + $0x2f8] sm:$0xff]
        %v399 = vld [vmem:[%s202 + $0x300] sm:$0xff]
        %v400 = vld [vmem:[%s202 + $0x308] sm:$0xff]
        %v401 = vld [vmem:[%s202 + $0x310] sm:$0xff]
        %v402 = vld [vmem:[%s202 + $0x318] sm:$0xff]
        %v403 = vld [vmem:[%s202 + $0x320] sm:$0xff]
        %v404 = vld [vmem:[%s202 + $0x328] sm:$0xff]
        %v405 = vld [vmem:[%s202 + $0x330] sm:$0xff]
        %v406 = vld [vmem:[%s202 + $0x338] sm:$0xff]
        %v407 = vld [vmem:[%s202 + $0x340] sm:$0xff]
        %v408 = vld [vmem:[%s202 + $0x348] sm:$0xff]
        %v409 = vld [vmem:[%s202 + $0x350] sm:$0xff]
        %v410 = vld [vmem:[%s202 + $0x358] sm:$0xff]
        %v411 = vld [vmem:[%s202 + $0x360] sm:$0xff]
        %v412 = vld [vmem:[%s202 + $0x368] sm:$0xff]
        %v413 = vld [vmem:[%s202 + $0x370] sm:$0xff]
        %v414 = vld [vmem:[%s202 + $0x378] sm:$0xff]
        %v415 = vld [vmem:[%s202 + $0x380] sm:$0xff]
        %v416 = vld [vmem:[%s202 + $0x388] sm:$0xff]
        %v417 = vld [vmem:[%s202 + $0x390] sm:$0xff]
        %v418 = vld [vmem:[%s202 + $0x398] sm:$0xff]
        %v419 = vld [vmem:[%s202 + $0x3a0] sm:$0xff]
        %v420 = vld [vmem:[%s202 + $0x3a8] sm:$0xff]
        %v421 = vld [vmem:[%s202 + $0x3b0] sm:$0xff]
        %v422 = vld [vmem:[%s202 + $0x3b8] sm:$0xff]
        %v423 = vld [vmem:[%s202 + $0x3c0] sm:$0xff]
        %v424 = vld [vmem:[%s202 + $0x3c8] sm:$0xff]
        %v425 = vld [vmem:[%s202 + $0x3d0] sm:$0xff]
        %v426 = vld [vmem:[%s202 + $0x3d8] sm:$0xff]
        %v427 = vld [vmem:[%s202 + $0x3e0] sm:$0xff]
        %v428 = vld [vmem:[%s202 + $0x3e8] sm:$0xff]
        %v429 = vld [vmem:[%s202 + $0x3f0] sm:$0xff]
        %v430 = vld [vmem:[%s202 + $0x3f8] sm:$0xff]
        %v431 = vld [vmem:[%s202 + $0x400] sm:$0xff]
        %v432 = vld [vmem:[%s202 + $0x408] sm:$0xff]
        %v433 = vld [vmem:[%s202 + $0x410] sm:$0xff]
        %v434 = vld [vmem:[%s202 + $0x418] sm:$0xff]
        %v435 = vld [vmem:[%s202 + $0x420] sm:$0xff]
        %v436 = vld [vmem:[%s202 + $0x428] sm:$0xff]
        %v437 = vld [vmem:[%s202 + $0x430] sm:$0xff]
        %v438 = vld [vmem:[%s202 + $0x438] sm:$0xff]
        %v439 = vld [vmem:[%s202 + $0x440] sm:$0xff]
        %v440 = vld [vmem:[%s202 + $0x448] sm:$0xff]
        %v441 = vld [vmem:[%s202 + $0x450] sm:$0xff]
        %v442 = vld [vmem:[%s202 + $0x458] sm:$0xff]
        %v443 = vld [vmem:[%s202 + $0x460] sm:$0xff]
        %v444 = vld [vmem:[%s202 + $0x468] sm:$0xff]
        %v445 = vld [vmem:[%s202 + $0x470] sm:$0xff]
        %v446 = vld [vmem:[%s202 + $0x478] sm:$0xff]
        %v447 = vld [vmem:[%s202 + $0x480] sm:$0xff]
        %v448 = vld [vmem:[%s202 + $0x488] sm:$0xff]
        %v449 = vld [vmem:[%s202 + $0x490] sm:$0xff]
        %v450 = vld [vmem:[%s202 + $0x498] sm:$0xff]
        %v451 = vld [vmem:[%s202 + $0x4a0] sm:$0xff]
        %v452 = vld [vmem:[%s202 + $0x4a8] sm:$0xff]
        %v453 = vld [vmem:[%s202 + $0x4b0] sm:$0xff]
        %v454 = vld [vmem:[%s202 + $0x4b8] sm:$0xff]
        %v455 = vld [vmem:[%s202 + $0x4c0] sm:$0xff]
        %v456 = vld [vmem:[%s202 + $0x4c8] sm:$0xff]
        %v457 = vld [vmem:[%s202 + $0x4d0] sm:$0xff]
        %v458 = vld [vmem:[%s202 + $0x4d8] sm:$0xff]
        %v459 = vld [vmem:[%s202 + $0x4e0] sm:$0xff]
        %v460 = vld [vmem:[%s202 + $0x4e8] sm:$0xff]
        %v461 = vld [vmem:[%s202 + $0x4f0] sm:$0xff]
        %v462 = vld [vmem:[%s202 + $0x4f8] sm:$0xff]
        %v463 = vld [vmem:[%s202 + $0x500] sm:$0xff]
        %v464 = vld [vmem:[%s202 + $0x508] sm:$0xff]
        %v465 = vld [vmem:[%s202 + $0x510] sm:$0xff]
        %v466 = vld [vmem:[%s202 + $0x518] sm:$0xff]
        %v467 = vld [vmem:[%s202 + $0x520] sm:$0xff]
        %v468 = vld [vmem:[%s202 + $0x528] sm:$0xff]
        %v469 = vld [vmem:[%s202 + $0x530] sm:$0xff]
        %v470 = vld [vmem:[%s202 + $0x538] sm:$0xff]
        %v471 = vld [vmem:[%s202 + $0x540] sm:$0xff]
        %v472 = vld [vmem:[%s202 + $0x548] sm:$0xff]
        %v473 = vld [vmem:[%s202 + $0x550] sm:$0xff]
        %v474 = vld [vmem:[%s202 + $0x558] sm:$0xff]
        %v475 = vld [vmem:[%s202 + $0x560] sm:$0xff]
        %v476 = vld [vmem:[%s202 + $0x568] sm:$0xff]
        %v477 = vld [vmem:[%s202 + $0x570] sm:$0xff]
        %v478 = vld [vmem:[%s202 + $0x578] sm:$0xff]
        %v479 = vld [vmem:[%s202 + $0x580] sm:$0xff]
        %v480 = vld [vmem:[%s202 + $0x588] sm:$0xff]
        %v481 = vld [vmem:[%s202 + $0x590] sm:$0xff]
        %v482 = vld [vmem:[%s202 + $0x598] sm:$0xff]
        %v483 = vld [vmem:[%s202 + $0x5a0] sm:$0xff]
        %v484 = vld [vmem:[%s202 + $0x5a8] sm:$0xff]
        %v485 = vld [vmem:[%s202 + $0x5b0] sm:$0xff]
        %v486 = vld [vmem:[%s202 + $0x5b8] sm:$0xff]
        %v487 = vld [vmem:[%s202 + $0x5c0] sm:$0xff]
        %v488 = vld [vmem:[%s202 + $0x5c8] sm:$0xff]
        %v489 = vld [vmem:[%s202 + $0x5d0] sm:$0xff]
        %v490 = vld [vmem:[%s202 + $0x5d8] sm:$0xff]
        %v491 = vld [vmem:[%s202 + $0x5e0] sm:$0xff]
        %v492 = vld [vmem:[%s202 + $0x5e8] sm:$0xff]
        %v493 = vld [vmem:[%s202 + $0x5f0] sm:$0xff]
        %v494 = vld [vmem:[%s202 + $0x5f8] sm:$0xff]
        %v687 = vunpack.c.l.b16 %v303
        %v688 = vunpack.c.h.b16 %v303
        %v689 = vunpack.c.l.b16 %v304
        %v690 = vunpack.c.h.b16 %v304
        %v691 = vunpack.c.l.b16 %v305
        %v692 = vunpack.c.h.b16 %v305
        %v693 = vunpack.c.l.b16 %v306
        %v694 = vunpack.c.h.b16 %v306
        %v695 = vunpack.c.l.b16 %v307
        %v696 = vunpack.c.h.b16 %v307
        %v697 = vunpack.c.l.b16 %v308
        %v698 = vunpack.c.h.b16 %v308
        %v699 = vunpack.c.l.b16 %v309
        %v700 = vunpack.c.h.b16 %v309
        %v701 = vunpack.c.l.b16 %v310
        %v702 = vunpack.c.h.b16 %v310
        %v703 = vunpack.c.l.b16 %v311
        %v704 = vunpack.c.h.b16 %v311
        %v705 = vunpack.c.l.b16 %v312
        %v706 = vunpack.c.h.b16 %v312
        %v707 = vunpack.c.l.b16 %v313
        %v708 = vunpack.c.h.b16 %v313
        %v709 = vunpack.c.l.b16 %v314
        %v710 = vunpack.c.h.b16 %v314
        %v711 = vunpack.c.l.b16 %v315
        %v712 = vunpack.c.h.b16 %v315
        %v713 = vunpack.c.l.b16 %v316
        %v714 = vunpack.c.h.b16 %v316
        %v715 = vunpack.c.l.b16 %v317
        %v716 = vunpack.c.h.b16 %v317
        %v717 = vunpack.c.l.b16 %v318
        %v718 = vunpack.c.h.b16 %v318
        %v719 = vunpack.c.l.b16 %v319
        %v720 = vunpack.c.h.b16 %v319
        %v721 = vunpack.c.l.b16 %v320
        %v722 = vunpack.c.h.b16 %v320
        %v723 = vunpack.c.l.b16 %v321
        %v724 = vunpack.c.h.b16 %v321
        %v725 = vunpack.c.l.b16 %v322
        %v726 = vunpack.c.h.b16 %v322
        %v727 = vunpack.c.l.b16 %v323
        %v728 = vunpack.c.h.b16 %v323
        %v729 = vunpack.c.l.b16 %v324
        %v730 = vunpack.c.h.b16 %v324
        %v731 = vunpack.c.l.b16 %v325
        %v732 = vunpack.c.h.b16 %v325
        %v733 = vunpack.c.l.b16 %v326
        %v734 = vunpack.c.h.b16 %v326
        %v735 = vunpack.c.l.b16 %v327
        %v736 = vunpack.c.h.b16 %v327
        %v737 = vunpack.c.l.b16 %v328
        %v738 = vunpack.c.h.b16 %v328
        %v739 = vunpack.c.l.b16 %v329
        %v740 = vunpack.c.h.b16 %v329
        %v741 = vunpack.c.l.b16 %v330
        %v742 = vunpack.c.h.b16 %v330
        %v743 = vunpack.c.l.b16 %v331
        %v744 = vunpack.c.h.b16 %v331
        %v745 = vunpack.c.l.b16 %v332
        %v746 = vunpack.c.h.b16 %v332
        %v747 = vunpack.c.l.b16 %v333
        %v748 = vunpack.c.h.b16 %v333
        %v749 = vunpack.c.l.b16 %v334
        %v750 = vunpack.c.h.b16 %v334
        %v751 = vunpack.c.l.b16 %v335
        %v752 = vunpack.c.h.b16 %v335
        %v753 = vunpack.c.l.b16 %v336
        %v754 = vunpack.c.h.b16 %v336
        %v755 = vunpack.c.l.b16 %v337
        %v756 = vunpack.c.h.b16 %v337
        %v757 = vunpack.c.l.b16 %v338
        %v758 = vunpack.c.h.b16 %v338
        %v759 = vunpack.c.l.b16 %v339
        %v760 = vunpack.c.h.b16 %v339
        %v761 = vunpack.c.l.b16 %v340
        %v762 = vunpack.c.h.b16 %v340
        %v763 = vunpack.c.l.b16 %v341
        %v764 = vunpack.c.h.b16 %v341
        %v765 = vunpack.c.l.b16 %v342
        %v766 = vunpack.c.h.b16 %v342
        %v767 = vunpack.c.l.b16 %v343
        %v768 = vunpack.c.h.b16 %v343
        %v769 = vunpack.c.l.b16 %v344
        %v770 = vunpack.c.h.b16 %v344
        %v771 = vunpack.c.l.b16 %v345
        %v772 = vunpack.c.h.b16 %v345
        %v773 = vunpack.c.l.b16 %v346
        %v774 = vunpack.c.h.b16 %v346
        %v775 = vunpack.c.l.b16 %v347
        %v776 = vunpack.c.h.b16 %v347
        %v777 = vunpack.c.l.b16 %v348
        %v778 = vunpack.c.h.b16 %v348
        %v779 = vunpack.c.l.b16 %v349
        %v780 = vunpack.c.h.b16 %v349
        %v781 = vunpack.c.l.b16 %v350
        %v782 = vunpack.c.h.b16 %v350
        %v783 = vunpack.c.l.b16 %v351
        %v784 = vunpack.c.h.b16 %v351
        %v785 = vunpack.c.l.b16 %v352
        %v786 = vunpack.c.h.b16 %v352
        %v787 = vunpack.c.l.b16 %v353
        %v788 = vunpack.c.h.b16 %v353
        %v789 = vunpack.c.l.b16 %v354
        %v790 = vunpack.c.h.b16 %v354
        %v791 = vunpack.c.l.b16 %v355
        %v792 = vunpack.c.h.b16 %v355
        %v793 = vunpack.c.l.b16 %v356
        %v794 = vunpack.c.h.b16 %v356
        %v795 = vunpack.c.l.b16 %v357
        %v796 = vunpack.c.h.b16 %v357
        %v797 = vunpack.c.l.b16 %v358
        %v798 = vunpack.c.h.b16 %v358
        %v799 = vunpack.c.l.b16 %v359
        %v800 = vunpack.c.h.b16 %v359
        %v801 = vunpack.c.l.b16 %v360
        %v802 = vunpack.c.h.b16 %v360
        %v803 = vunpack.c.l.b16 %v361
        %v804 = vunpack.c.h.b16 %v361
        %v805 = vunpack.c.l.b16 %v362
        %v806 = vunpack.c.h.b16 %v362
        %v807 = vunpack.c.l.b16 %v363
        %v808 = vunpack.c.h.b16 %v363
        %v809 = vunpack.c.l.b16 %v364
        %v810 = vunpack.c.h.b16 %v364
        %v811 = vunpack.c.l.b16 %v365
        %v812 = vunpack.c.h.b16 %v365
        %v813 = vunpack.c.l.b16 %v366
        %v814 = vunpack.c.h.b16 %v366
        %v815 = vunpack.c.l.b16 %v367
        %v816 = vunpack.c.h.b16 %v367
        %v817 = vunpack.c.l.b16 %v368
        %v818 = vunpack.c.h.b16 %v368
        %v819 = vunpack.c.l.b16 %v369
        %v820 = vunpack.c.h.b16 %v369
        %v821 = vunpack.c.l.b16 %v370
        %v822 = vunpack.c.h.b16 %v370
        %v823 = vunpack.c.l.b16 %v371
        %v824 = vunpack.c.h.b16 %v371
        %v825 = vunpack.c.l.b16 %v372
        %v826 = vunpack.c.h.b16 %v372
        %v827 = vunpack.c.l.b16 %v373
        %v828 = vunpack.c.h.b16 %v373
        %v829 = vunpack.c.l.b16 %v374
        %v830 = vunpack.c.h.b16 %v374
        %v831 = vunpack.c.l.b16 %v375
        %v832 = vunpack.c.h.b16 %v375
        %v833 = vunpack.c.l.b16 %v376
        %v834 = vunpack.c.h.b16 %v376
        %v835 = vunpack.c.l.b16 %v377
        %v836 = vunpack.c.h.b16 %v377
        %v837 = vunpack.c.l.b16 %v378
        %v838 = vunpack.c.h.b16 %v378
        %v839 = vunpack.c.l.b16 %v379
        %v840 = vunpack.c.h.b16 %v379
        %v841 = vunpack.c.l.b16 %v380
        %v842 = vunpack.c.h.b16 %v380
        %v843 = vunpack.c.l.b16 %v381
        %v844 = vunpack.c.h.b16 %v381
        %v845 = vunpack.c.l.b16 %v382
        %v846 = vunpack.c.h.b16 %v382
        %v847 = vunpack.c.l.b16 %v383
        %v848 = vunpack.c.h.b16 %v383
        %v849 = vunpack.c.l.b16 %v384
        %v850 = vunpack.c.h.b16 %v384
        %v851 = vunpack.c.l.b16 %v385
        %v852 = vunpack.c.h.b16 %v385
        %v853 = vunpack.c.l.b16 %v386
        %v854 = vunpack.c.h.b16 %v386
        %v855 = vunpack.c.l.b16 %v387
        %v856 = vunpack.c.h.b16 %v387
        %v857 = vunpack.c.l.b16 %v388
        %v858 = vunpack.c.h.b16 %v388
        %v859 = vunpack.c.l.b16 %v389
        %v860 = vunpack.c.h.b16 %v389
        %v861 = vunpack.c.l.b16 %v390
        %v862 = vunpack.c.h.b16 %v390
        %v863 = vunpack.c.l.b16 %v391
        %v864 = vunpack.c.h.b16 %v391
        %v865 = vunpack.c.l.b16 %v392
        %v866 = vunpack.c.h.b16 %v392
        %v867 = vunpack.c.l.b16 %v393
        %v868 = vunpack.c.h.b16 %v393
        %v869 = vunpack.c.l.b16 %v394
        %v870 = vunpack.c.h.b16 %v394
        %v871 = vunpack.c.l.b16 %v395
        %v872 = vunpack.c.h.b16 %v395
        %v873 = vunpack.c.l.b16 %v396
        %v874 = vunpack.c.h.b16 %v396
        %v875 = vunpack.c.l.b16 %v397
        %v876 = vunpack.c.h.b16 %v397
        %v877 = vunpack.c.l.b16 %v398
        %v878 = vunpack.c.h.b16 %v398
        %v879 = vunpack.c.l.b16 %v399
        %v880 = vunpack.c.h.b16 %v399
        %v881 = vunpack.c.l.b16 %v400
        %v882 = vunpack.c.h.b16 %v400
        %v883 = vunpack.c.l.b16 %v401
        %v884 = vunpack.c.h.b16 %v401
        %v885 = vunpack.c.l.b16 %v402
        %v886 = vunpack.c.h.b16 %v402
        %v887 = vunpack.c.l.b16 %v403
        %v888 = vunpack.c.h.b16 %v403
        %v889 = vunpack.c.l.b16 %v404
        %v890 = vunpack.c.h.b16 %v404
        %v891 = vunpack.c.l.b16 %v405
        %v892 = vunpack.c.h.b16 %v405
        %v893 = vunpack.c.l.b16 %v406
        %v894 = vunpack.c.h.b16 %v406
        %v895 = vunpack.c.l.b16 %v407
        %v896 = vunpack.c.h.b16 %v407
        %v897 = vunpack.c.l.b16 %v408
        %v898 = vunpack.c.h.b16 %v408
        %v899 = vunpack.c.l.b16 %v409
        %v900 = vunpack.c.h.b16 %v409
        %v901 = vunpack.c.l.b16 %v410
        %v902 = vunpack.c.h.b16 %v410
        %v903 = vunpack.c.l.b16 %v411
        %v904 = vunpack.c.h.b16 %v411
        %v905 = vunpack.c.l.b16 %v412
        %v906 = vunpack.c.h.b16 %v412
        %v907 = vunpack.c.l.b16 %v413
        %v908 = vunpack.c.h.b16 %v413
        %v909 = vunpack.c.l.b16 %v414
        %v910 = vunpack.c.h.b16 %v414
        %v911 = vunpack.c.l.b16 %v415
        %v912 = vunpack.c.h.b16 %v415
        %v913 = vunpack.c.l.b16 %v416
        %v914 = vunpack.c.h.b16 %v416
        %v915 = vunpack.c.l.b16 %v417
        %v916 = vunpack.c.h.b16 %v417
        %v917 = vunpack.c.l.b16 %v418
        %v918 = vunpack.c.h.b16 %v418
        %v919 = vunpack.c.l.b16 %v419
        %v920 = vunpack.c.h.b16 %v419
        %v921 = vunpack.c.l.b16 %v420
        %v922 = vunpack.c.h.b16 %v420
        %v923 = vunpack.c.l.b16 %v421
        %v924 = vunpack.c.h.b16 %v421
        %v925 = vunpack.c.l.b16 %v422
        %v926 = vunpack.c.h.b16 %v422
        %v927 = vunpack.c.l.b16 %v423
        %v928 = vunpack.c.h.b16 %v423
        %v929 = vunpack.c.l.b16 %v424
        %v930 = vunpack.c.h.b16 %v424
        %v931 = vunpack.c.l.b16 %v425
        %v932 = vunpack.c.h.b16 %v425
        %v933 = vunpack.c.l.b16 %v426
        %v934 = vunpack.c.h.b16 %v426
        %v935 = vunpack.c.l.b16 %v427
        %v936 = vunpack.c.h.b16 %v427
        %v937 = vunpack.c.l.b16 %v428
        %v938 = vunpack.c.h.b16 %v428
        %v939 = vunpack.c.l.b16 %v429
        %v940 = vunpack.c.h.b16 %v429
        %v941 = vunpack.c.l.b16 %v430
        %v942 = vunpack.c.h.b16 %v430
        %v943 = vunpack.c.l.b16 %v431
        %v944 = vunpack.c.h.b16 %v431
        %v945 = vunpack.c.l.b16 %v432
        %v946 = vunpack.c.h.b16 %v432
        %v947 = vunpack.c.l.b16 %v433
        %v948 = vunpack.c.h.b16 %v433
        %v949 = vunpack.c.l.b16 %v434
        %v950 = vunpack.c.h.b16 %v434
        %v951 = vunpack.c.l.b16 %v435
        %v952 = vunpack.c.h.b16 %v435
        %v953 = vunpack.c.l.b16 %v436
        %v954 = vunpack.c.h.b16 %v436
        %v955 = vunpack.c.l.b16 %v437
        %v956 = vunpack.c.h.b16 %v437
        %v957 = vunpack.c.l.b16 %v438
        %v958 = vunpack.c.h.b16 %v438
        %v959 = vunpack.c.l.b16 %v439
        %v960 = vunpack.c.h.b16 %v439
        %v961 = vunpack.c.l.b16 %v440
        %v962 = vunpack.c.h.b16 %v440
        %v963 = vunpack.c.l.b16 %v441
        %v964 = vunpack.c.h.b16 %v441
        %v965 = vunpack.c.l.b16 %v442
        %v966 = vunpack.c.h.b16 %v442
        %v967 = vunpack.c.l.b16 %v443
        %v968 = vunpack.c.h.b16 %v443
        %v969 = vunpack.c.l.b16 %v444
        %v970 = vunpack.c.h.b16 %v444
        %v971 = vunpack.c.l.b16 %v445
        %v972 = vunpack.c.h.b16 %v445
        %v973 = vunpack.c.l.b16 %v446
        %v974 = vunpack.c.h.b16 %v446
        %v975 = vunpack.c.l.b16 %v447
        %v976 = vunpack.c.h.b16 %v447
        %v977 = vunpack.c.l.b16 %v448
        %v978 = vunpack.c.h.b16 %v448
        %v979 = vunpack.c.l.b16 %v449
        %v980 = vunpack.c.h.b16 %v449
        %v981 = vunpack.c.l.b16 %v450
        %v982 = vunpack.c.h.b16 %v450
        %v983 = vunpack.c.l.b16 %v451
        %v984 = vunpack.c.h.b16 %v451
        %v985 = vunpack.c.l.b16 %v452
        %v986 = vunpack.c.h.b16 %v452
        %v987 = vunpack.c.l.b16 %v453
        %v988 = vunpack.c.h.b16 %v453
        %v989 = vunpack.c.l.b16 %v454
        %v990 = vunpack.c.h.b16 %v454
        %v991 = vunpack.c.l.b16 %v455
        %v992 = vunpack.c.h.b16 %v455
        %v993 = vunpack.c.l.b16 %v456
        %v994 = vunpack.c.h.b16 %v456
        %v995 = vunpack.c.l.b16 %v457
        %v996 = vunpack.c.h.b16 %v457
        %v997 = vunpack.c.l.b16 %v458
        %v998 = vunpack.c.h.b16 %v458
        %v999 = vunpack.c.l.b16 %v459
        %v1000 = vunpack.c.h.b16 %v459
        %v1001 = vunpack.c.l.b16 %v460
        %v1002 = vunpack.c.h.b16 %v460
        %v1003 = vunpack.c.l.b16 %v461
        %v1004 = vunpack.c.h.b16 %v461
        %v1005 = vunpack.c.l.b16 %v462
        %v1006 = vunpack.c.h.b16 %v462
        %v1007 = vunpack.c.l.b16 %v463
        %v1008 = vunpack.c.h.b16 %v463
        %v1009 = vunpack.c.l.b16 %v464
        %v1010 = vunpack.c.h.b16 %v464
        %v1011 = vunpack.c.l.b16 %v465
        %v1012 = vunpack.c.h.b16 %v465
        %v1013 = vunpack.c.l.b16 %v466
        %v1014 = vunpack.c.h.b16 %v466
        %v1015 = vunpack.c.l.b16 %v467
        %v1016 = vunpack.c.h.b16 %v467
        %v1017 = vunpack.c.l.b16 %v468
        %v1018 = vunpack.c.h.b16 %v468
        %v1019 = vunpack.c.l.b16 %v469
        %v1020 = vunpack.c.h.b16 %v469
        %v1021 = vunpack.c.l.b16 %v470
        %v1022 = vunpack.c.h.b16 %v470
        %v1023 = vunpack.c.l.b16 %v471
        %v1024 = vunpack.c.h.b16 %v471
        %v1025 = vunpack.c.l.b16 %v472
        %v1026 = vunpack.c.h.b16 %v472
        %v1027 = vunpack.c.l.b16 %v473
        %v1028 = vunpack.c.h.b16 %v473
        %v1029 = vunpack.c.l.b16 %v474
        %v1030 = vunpack.c.h.b16 %v474
        %v1031 = vunpack.c.l.b16 %v475
        %v1032 = vunpack.c.h.b16 %v475
        %v1033 = vunpack.c.l.b16 %v476
        %v1034 = vunpack.c.h.b16 %v476
        %v1035 = vunpack.c.l.b16 %v477
        %v1036 = vunpack.c.h.b16 %v477
        %v1037 = vunpack.c.l.b16 %v478
        %v1038 = vunpack.c.h.b16 %v478
        %v1039 = vunpack.c.l.b16 %v479
        %v1040 = vunpack.c.h.b16 %v479
        %v1041 = vunpack.c.l.b16 %v480
        %v1042 = vunpack.c.h.b16 %v480
        %v1043 = vunpack.c.l.b16 %v481
        %v1044 = vunpack.c.h.b16 %v481
        %v1045 = vunpack.c.l.b16 %v482
        %v1046 = vunpack.c.h.b16 %v482
        %v1047 = vunpack.c.l.b16 %v483
        %v1048 = vunpack.c.h.b16 %v483
        %v1049 = vunpack.c.l.b16 %v484
        %v1050 = vunpack.c.h.b16 %v484
        %v1051 = vunpack.c.l.b16 %v485
        %v1052 = vunpack.c.h.b16 %v485
        %v1053 = vunpack.c.l.b16 %v486
        %v1054 = vunpack.c.h.b16 %v486
        %v1055 = vunpack.c.l.b16 %v487
        %v1056 = vunpack.c.h.b16 %v487
        %v1057 = vunpack.c.l.b16 %v488
        %v1058 = vunpack.c.h.b16 %v488
        %v1059 = vunpack.c.l.b16 %v489
        %v1060 = vunpack.c.h.b16 %v489
        %v1061 = vunpack.c.l.b16 %v490
        %v1062 = vunpack.c.h.b16 %v490
        %v1063 = vunpack.c.l.b16 %v491
        %v1064 = vunpack.c.h.b16 %v491
        %v1065 = vunpack.c.l.b16 %v492
        %v1066 = vunpack.c.h.b16 %v492
        %v1067 = vunpack.c.l.b16 %v493
        %v1068 = vunpack.c.h.b16 %v493
        %v1069 = vunpack.c.l.b16 %v494
        %v1070 = vunpack.c.h.b16 %v494
        %v1071 = vpack.c.b16 %v691, %v687
        %v1072 = vpack.c.b16 %v692, %v688
        %v1073 = vpack.c.b16 %v693, %v689
        %v1074 = vpack.c.b16 %v694, %v690
        %v1075 = vpack.c.b16 %v699, %v695
        %v1076 = vpack.c.b16 %v700, %v696
        %v1077 = vpack.c.b16 %v701, %v697
        %v1078 = vpack.c.b16 %v702, %v698
        %v1079 = vpack.c.b16 %v707, %v703
        %v1080 = vpack.c.b16 %v708, %v704
        %v1081 = vpack.c.b16 %v709, %v705
        %v1082 = vpack.c.b16 %v710, %v706
        %v1083 = vpack.c.b16 %v715, %v711
        %v1084 = vpack.c.b16 %v716, %v712
        %v1085 = vpack.c.b16 %v717, %v713
        %v1086 = vpack.c.b16 %v718, %v714
        %v1087 = vpack.c.b16 %v723, %v719
        %v1088 = vpack.c.b16 %v724, %v720
        %v1089 = vpack.c.b16 %v725, %v721
        %v1090 = vpack.c.b16 %v726, %v722
        %v1091 = vpack.c.b16 %v731, %v727
        %v1092 = vpack.c.b16 %v732, %v728
        %v1093 = vpack.c.b16 %v733, %v729
        %v1094 = vpack.c.b16 %v734, %v730
        %v1095 = vpack.c.b16 %v739, %v735
        %v1096 = vpack.c.b16 %v740, %v736
        %v1097 = vpack.c.b16 %v741, %v737
        %v1098 = vpack.c.b16 %v742, %v738
        %v1099 = vpack.c.b16 %v747, %v743
        %v1100 = vpack.c.b16 %v748, %v744
        %v1101 = vpack.c.b16 %v749, %v745
        %v1102 = vpack.c.b16 %v750, %v746
        %v1103 = vpack.c.b16 %v755, %v751
        %v1104 = vpack.c.b16 %v756, %v752
        %v1105 = vpack.c.b16 %v757, %v753
        %v1106 = vpack.c.b16 %v758, %v754
        %v1107 = vpack.c.b16 %v763, %v759
        %v1108 = vpack.c.b16 %v764, %v760
        %v1109 = vpack.c.b16 %v765, %v761
        %v1110 = vpack.c.b16 %v766, %v762
        %v1111 = vpack.c.b16 %v771, %v767
        %v1112 = vpack.c.b16 %v772, %v768
        %v1113 = vpack.c.b16 %v773, %v769
        %v1114 = vpack.c.b16 %v774, %v770
        %v1115 = vpack.c.b16 %v779, %v775
        %v1116 = vpack.c.b16 %v780, %v776
        %v1117 = vpack.c.b16 %v781, %v777
        %v1118 = vpack.c.b16 %v782, %v778
        %v1119 = vpack.c.b16 %v787, %v783
        %v1120 = vpack.c.b16 %v788, %v784
        %v1121 = vpack.c.b16 %v789, %v785
        %v1122 = vpack.c.b16 %v790, %v786
        %v1123 = vpack.c.b16 %v795, %v791
        %v1124 = vpack.c.b16 %v796, %v792
        %v1125 = vpack.c.b16 %v797, %v793
        %v1126 = vpack.c.b16 %v798, %v794
        %v1127 = vpack.c.b16 %v803, %v799
        %v1128 = vpack.c.b16 %v804, %v800
        %v1129 = vpack.c.b16 %v805, %v801
        %v1130 = vpack.c.b16 %v806, %v802
        %v1131 = vpack.c.b16 %v811, %v807
        %v1132 = vpack.c.b16 %v812, %v808
        %v1133 = vpack.c.b16 %v813, %v809
        %v1134 = vpack.c.b16 %v814, %v810
        %v1135 = vpack.c.b16 %v819, %v815
        %v1136 = vpack.c.b16 %v820, %v816
        %v1137 = vpack.c.b16 %v821, %v817
        %v1138 = vpack.c.b16 %v822, %v818
        %v1139 = vpack.c.b16 %v827, %v823
        %v1140 = vpack.c.b16 %v828, %v824
        %v1141 = vpack.c.b16 %v829, %v825
        %v1142 = vpack.c.b16 %v830, %v826
        %v1143 = vpack.c.b16 %v835, %v831
        %v1144 = vpack.c.b16 %v836, %v832
        %v1145 = vpack.c.b16 %v837, %v833
        %v1146 = vpack.c.b16 %v838, %v834
        %v1147 = vpack.c.b16 %v843, %v839
        %v1148 = vpack.c.b16 %v844, %v840
        %v1149 = vpack.c.b16 %v845, %v841
        %v1150 = vpack.c.b16 %v846, %v842
        %v1151 = vpack.c.b16 %v851, %v847
        %v1152 = vpack.c.b16 %v852, %v848
        %v1153 = vpack.c.b16 %v853, %v849
        %v1154 = vpack.c.b16 %v854, %v850
        %v1155 = vpack.c.b16 %v859, %v855
        %v1156 = vpack.c.b16 %v860, %v856
        %v1157 = vpack.c.b16 %v861, %v857
        %v1158 = vpack.c.b16 %v862, %v858
        %v1159 = vpack.c.b16 %v867, %v863
        %v1160 = vpack.c.b16 %v868, %v864
        %v1161 = vpack.c.b16 %v869, %v865
        %v1162 = vpack.c.b16 %v870, %v866
        %v1163 = vpack.c.b16 %v875, %v871
        %v1164 = vpack.c.b16 %v876, %v872
        %v1165 = vpack.c.b16 %v877, %v873
        %v1166 = vpack.c.b16 %v878, %v874
        %v1167 = vpack.c.b16 %v883, %v879
        %v1168 = vpack.c.b16 %v884, %v880
        %v1169 = vpack.c.b16 %v885, %v881
        %v1170 = vpack.c.b16 %v886, %v882
        %v1171 = vpack.c.b16 %v891, %v887
        %v1172 = vpack.c.b16 %v892, %v888
        %v1173 = vpack.c.b16 %v893, %v889
        %v1174 = vpack.c.b16 %v894, %v890
        %v1175 = vpack.c.b16 %v899, %v895
        %v1176 = vpack.c.b16 %v900, %v896
        %v1177 = vpack.c.b16 %v901, %v897
        %v1178 = vpack.c.b16 %v902, %v898
        %v1179 = vpack.c.b16 %v907, %v903
        %v1180 = vpack.c.b16 %v908, %v904
        %v1181 = vpack.c.b16 %v909, %v905
        %v1182 = vpack.c.b16 %v910, %v906
        %v1183 = vpack.c.b16 %v915, %v911
        %v1184 = vpack.c.b16 %v916, %v912
        %v1185 = vpack.c.b16 %v917, %v913
        %v1186 = vpack.c.b16 %v918, %v914
        %v1187 = vpack.c.b16 %v923, %v919
        %v1188 = vpack.c.b16 %v924, %v920
        %v1189 = vpack.c.b16 %v925, %v921
        %v1190 = vpack.c.b16 %v926, %v922
        %v1191 = vpack.c.b16 %v931, %v927
        %v1192 = vpack.c.b16 %v932, %v928
        %v1193 = vpack.c.b16 %v933, %v929
        %v1194 = vpack.c.b16 %v934, %v930
        %v1195 = vpack.c.b16 %v939, %v935
        %v1196 = vpack.c.b16 %v940, %v936
        %v1197 = vpack.c.b16 %v941, %v937
        %v1198 = vpack.c.b16 %v942, %v938
        %v1199 = vpack.c.b16 %v947, %v943
        %v1200 = vpack.c.b16 %v948, %v944
        %v1201 = vpack.c.b16 %v949, %v945
        %v1202 = vpack.c.b16 %v950, %v946
        %v1203 = vpack.c.b16 %v955, %v951
        %v1204 = vpack.c.b16 %v956, %v952
        %v1205 = vpack.c.b16 %v957, %v953
        %v1206 = vpack.c.b16 %v958, %v954
        %v1207 = vpack.c.b16 %v963, %v959
        %v1208 = vpack.c.b16 %v964, %v960
        %v1209 = vpack.c.b16 %v965, %v961
        %v1210 = vpack.c.b16 %v966, %v962
        %v1211 = vpack.c.b16 %v971, %v967
        %v1212 = vpack.c.b16 %v972, %v968
        %v1213 = vpack.c.b16 %v973, %v969
        %v1214 = vpack.c.b16 %v974, %v970
        %v1215 = vpack.c.b16 %v979, %v975
        %v1216 = vpack.c.b16 %v980, %v976
        %v1217 = vpack.c.b16 %v981, %v977
        %v1218 = vpack.c.b16 %v982, %v978
        %v1219 = vpack.c.b16 %v987, %v983
        %v1220 = vpack.c.b16 %v988, %v984
        %v1221 = vpack.c.b16 %v989, %v985
        %v1222 = vpack.c.b16 %v990, %v986
        %v1223 = vpack.c.b16 %v995, %v991
        %v1224 = vpack.c.b16 %v996, %v992
        %v1225 = vpack.c.b16 %v997, %v993
        %v1226 = vpack.c.b16 %v998, %v994
        %v1227 = vpack.c.b16 %v1003, %v999
        %v1228 = vpack.c.b16 %v1004, %v1000
        %v1229 = vpack.c.b16 %v1005, %v1001
        %v1230 = vpack.c.b16 %v1006, %v1002
        %v1231 = vpack.c.b16 %v1011, %v1007
        %v1232 = vpack.c.b16 %v1012, %v1008
        %v1233 = vpack.c.b16 %v1013, %v1009
        %v1234 = vpack.c.b16 %v1014, %v1010
        %v1235 = vpack.c.b16 %v1019, %v1015
        %v1236 = vpack.c.b16 %v1020, %v1016
        %v1237 = vpack.c.b16 %v1021, %v1017
        %v1238 = vpack.c.b16 %v1022, %v1018
        %v1239 = vpack.c.b16 %v1027, %v1023
        %v1240 = vpack.c.b16 %v1028, %v1024
        %v1241 = vpack.c.b16 %v1029, %v1025
        %v1242 = vpack.c.b16 %v1030, %v1026
        %v1243 = vpack.c.b16 %v1035, %v1031
        %v1244 = vpack.c.b16 %v1036, %v1032
        %v1245 = vpack.c.b16 %v1037, %v1033
        %v1246 = vpack.c.b16 %v1038, %v1034
        %v1247 = vpack.c.b16 %v1043, %v1039
        %v1248 = vpack.c.b16 %v1044, %v1040
        %v1249 = vpack.c.b16 %v1045, %v1041
        %v1250 = vpack.c.b16 %v1046, %v1042
        %v1251 = vpack.c.b16 %v1051, %v1047
        %v1252 = vpack.c.b16 %v1052, %v1048
        %v1253 = vpack.c.b16 %v1053, %v1049
        %v1254 = vpack.c.b16 %v1054, %v1050
        %v1255 = vpack.c.b16 %v1059, %v1055
        %v1256 = vpack.c.b16 %v1060, %v1056
        %v1257 = vpack.c.b16 %v1061, %v1057
        %v1258 = vpack.c.b16 %v1062, %v1058
        %v1259 = vpack.c.b16 %v1067, %v1063
        %v1260 = vpack.c.b16 %v1068, %v1064
        %v1261 = vpack.c.b16 %v1069, %v1065
        %v1262 = vpack.c.b16 %v1070, %v1066
        %1455 = vmatprep.subr.bf16.mxu0 %v1072
        %1456 = vmatpush1.bf16.msra.mxu0 %v1071
        %1457 = vmatprep.subr.bf16.mxu0 %v1076
        %1458 = vmatpush1.bf16.msra.mxu0 %v1075
        %1459 = vmatprep.subr.bf16.mxu0 %v1080
        %1460 = vmatpush1.bf16.msra.mxu0 %v1079
        %1461 = vmatprep.subr.bf16.mxu0 %v1084
        %1462 = vmatpush1.bf16.msra.mxu0 %v1083
        %1463 = vmatprep.subr.bf16.mxu0 %v1088
        %1464 = vmatpush1.bf16.msra.mxu0 %v1087
        %1465 = vmatprep.subr.bf16.mxu0 %v1092
        %1466 = vmatpush1.bf16.msra.mxu0 %v1091
        %1467 = vmatprep.subr.bf16.mxu0 %v1096
        %1468 = vmatpush1.bf16.msra.mxu0 %v1095
        %1469 = vmatprep.subr.bf16.mxu0 %v1100
        %1470 = vmatpush1.bf16.msra.mxu0 %v1099
        %1471 = vmatprep.subr.bf16.mxu0 %v1104
        %1472 = vmatpush1.bf16.msra.mxu0 %v1103
        %1473 = vmatprep.subr.bf16.mxu0 %v1108
        %1474 = vmatpush1.bf16.msra.mxu0 %v1107
        %1475 = vmatprep.subr.bf16.mxu0 %v1112
        %1476 = vmatpush1.bf16.msra.mxu0 %v1111
        %1477 = vmatprep.subr.bf16.mxu0 %v1116
        %1478 = vmatpush1.bf16.msra.mxu0 %v1115
        %1479 = vmatprep.subr.bf16.mxu0 %v1120
        %1480 = vmatpush1.bf16.msra.mxu0 %v1119
        %1481 = vmatprep.subr.bf16.mxu0 %v1124
        %1482 = vmatpush1.bf16.msra.mxu0 %v1123
        %1483 = vmatprep.subr.bf16.mxu0 %v1128
        %1484 = vmatpush1.bf16.msra.mxu0 %v1127
        %1485 = vmatprep.subr.bf16.mxu0 %v1132
        %1486 = vmatpush1.bf16.msra.mxu0 %v1131
        %1487 = vmatprep.mubr.bf16.mxu0 %v297
        %1488 = vmatmul.mubr.bf16.gmra.mrb[0].mxu0 %v296
        %v1489 = vpop.f32.mrb[0].mxu0
        %v1490 = vadd.f32 0.0, %v1489
        %v1491 = vpop.f32.mrb[0].mxu0
        %v1492 = vadd.f32 0.0, %v1491
        %v1493 = vpop.f32.mrb[0].mxu0
        %v1494 = vpop.f32.mrb[0].mxu0
        %1495 = vdwg.mxu0
        %1496 = vmatprep.subr.bf16.mxu0 %v1136
        %1497 = vmatpush1.bf16.msra.mxu0 %v1135
        %1498 = vmatprep.subr.bf16.mxu0 %v1140
        %1499 = vmatpush1.bf16.msra.mxu0 %v1139
        %1500 = vmatprep.subr.bf16.mxu0 %v1144
        %1501 = vmatpush1.bf16.msra.mxu0 %v1143
        %1502 = vmatprep.subr.bf16.mxu0 %v1148
        %1503 = vmatpush1.bf16.msra.mxu0 %v1147
        %1504 = vmatprep.subr.bf16.mxu0 %v1152
        %1505 = vmatpush1.bf16.msra.mxu0 %v1151
        %1506 = vmatprep.subr.bf16.mxu0 %v1156
        %1507 = vmatpush1.bf16.msra.mxu0 %v1155
        %1508 = vmatprep.subr.bf16.mxu0 %v1160
        %1509 = vmatpush1.bf16.msra.mxu0 %v1159
        %1510 = vmatprep.subr.bf16.mxu0 %v1164
        %1511 = vmatpush1.bf16.msra.mxu0 %v1163
        %1512 = vmatprep.subr.bf16.mxu0 %v1168
        %1513 = vmatpush1.bf16.msra.mxu0 %v1167
        %1514 = vmatprep.subr.bf16.mxu0 %v1172
        %1515 = vmatpush1.bf16.msra.mxu0 %v1171
        %1516 = vmatprep.subr.bf16.mxu0 %v1176
        %1517 = vmatpush1.bf16.msra.mxu0 %v1175
        %1518 = vmatprep.subr.bf16.mxu0 %v1180
        %1519 = vmatpush1.bf16.msra.mxu0 %v1179
        %1520 = vmatprep.subr.bf16.mxu0 %v1184
        %1521 = vmatpush1.bf16.msra.mxu0 %v1183
        %1522 = vmatprep.subr.bf16.mxu0 %v1188
        %1523 = vmatpush1.bf16.msra.mxu0 %v1187
        %1524 = vmatprep.subr.bf16.mxu0 %v1192
        %1525 = vmatpush1.bf16.msra.mxu0 %v1191
        %1526 = vmatprep.subr.bf16.mxu0 %v1196
        %1527 = vmatpush1.bf16.msra.mxu0 %v1195
        %1528 = vmatprep.mubr.bf16.mxu0 %v299
        %1529 = vmatmul.mubr.bf16.gmra.mrb[0].mxu0 %v298
        %v1530 = vpop.f32.mrb[0].mxu0
        %v1531 = vadd.f32 %v1490, %v1530
        %v1532 = vpop.f32.mrb[0].mxu0
        %v1533 = vadd.f32 %v1492, %v1532
        %v1534 = vpop.f32.mrb[0].mxu0
        %v1535 = vpop.f32.mrb[0].mxu0
        %1536 = vdwg.mxu0
        %1537 = vmatprep.subr.bf16.mxu0 %v1200
        %1538 = vmatpush1.bf16.msra.mxu0 %v1199
        %1539 = vmatprep.subr.bf16.mxu0 %v1204
        %1540 = vmatpush1.bf16.msra.mxu0 %v1203
        %1541 = vmatprep.subr.bf16.mxu0 %v1208
        %1542 = vmatpush1.bf16.msra.mxu0 %v1207
        %1543 = vmatprep.subr.bf16.mxu0 %v1212
        %1544 = vmatpush1.bf16.msra.mxu0 %v1211
        %1545 = vmatprep.subr.bf16.mxu0 %v1216
        %1546 = vmatpush1.bf16.msra.mxu0 %v1215
        %1547 = vmatprep.subr.bf16.mxu0 %v1220
        %1548 = vmatpush1.bf16.msra.mxu0 %v1219
        %1549 = vmatprep.subr.bf16.mxu0 %v1224
        %1550 = vmatpush1.bf16.msra.mxu0 %v1223
        %1551 = vmatprep.subr.bf16.mxu0 %v1228
        %1552 = vmatpush1.bf16.msra.mxu0 %v1227
        %1553 = vmatprep.subr.bf16.mxu0 %v1232
        %1554 = vmatpush1.bf16.msra.mxu0 %v1231
        %1555 = vmatprep.subr.bf16.mxu0 %v1236
        %1556 = vmatpush1.bf16.msra.mxu0 %v1235
        %1557 = vmatprep.subr.bf16.mxu0 %v1240
        %1558 = vmatpush1.bf16.msra.mxu0 %v1239
        %1559 = vmatprep.subr.bf16.mxu0 %v1244
        %1560 = vmatpush1.bf16.msra.mxu0 %v1243
        %1561 = vmatprep.subr.bf16.mxu0 %v1248
        %1562 = vmatpush1.bf16.msra.mxu0 %v1247
        %1563 = vmatprep.subr.bf16.mxu0 %v1252
        %1564 = vmatpush1.bf16.msra.mxu0 %v1251
        %1565 = vmatprep.subr.bf16.mxu0 %v1256
        %1566 = vmatpush1.bf16.msra.mxu0 %v1255
        %1567 = vmatprep.subr.bf16.mxu0 %v1260
        %1568 = vmatpush1.bf16.msra.mxu0 %v1259
        %1569 = vmatprep.mubr.bf16.mxu0 %v301
        %1570 = vmatmul.mubr.bf16.gmra.mrb[0].mxu0 %v300
        %v1571 = vpop.f32.mrb[0].mxu0
        %v1572 = vadd.f32 %v1531, %v1571
        %v1573 = vpop.f32.mrb[0].mxu0
        %v1574 = vadd.f32 %v1533, %v1573
        %v1575 = vpop.f32.mrb[0].mxu0
        %v1576 = vpop.f32.mrb[0].mxu0
        %1577 = vdwg.mxu0
        %1578 = vmatprep.subr.bf16.mxu0 %v1074
        %1579 = vmatpush1.bf16.msra.mxu0 %v1073
        %1580 = vmatprep.subr.bf16.mxu0 %v1078
        %1581 = vmatpush1.bf16.msra.mxu0 %v1077
        %1582 = vmatprep.subr.bf16.mxu0 %v1082
        %1583 = vmatpush1.bf16.msra.mxu0 %v1081
        %1584 = vmatprep.subr.bf16.mxu0 %v1086
        %1585 = vmatpush1.bf16.msra.mxu0 %v1085
        %1586 = vmatprep.subr.bf16.mxu0 %v1090
        %1587 = vmatpush1.bf16.msra.mxu0 %v1089
        %1588 = vmatprep.subr.bf16.mxu0 %v1094
        %1589 = vmatpush1.bf16.msra.mxu0 %v1093
        %1590 = vmatprep.subr.bf16.mxu0 %v1098
        %1591 = vmatpush1.bf16.msra.mxu0 %v1097
        %1592 = vmatprep.subr.bf16.mxu0 %v1102
        %1593 = vmatpush1.bf16.msra.mxu0 %v1101
        %1594 = vmatprep.subr.bf16.mxu0 %v1106
        %1595 = vmatpush1.bf16.msra.mxu0 %v1105
        %1596 = vmatprep.subr.bf16.mxu0 %v1110
        %1597 = vmatpush1.bf16.msra.mxu0 %v1109
        %1598 = vmatprep.subr.bf16.mxu0 %v1114
        %1599 = vmatpush1.bf16.msra.mxu0 %v1113
        %1600 = vmatprep.subr.bf16.mxu0 %v1118
        %1601 = vmatpush1.bf16.msra.mxu0 %v1117
        %1602 = vmatprep.subr.bf16.mxu0 %v1122
        %1603 = vmatpush1.bf16.msra.mxu0 %v1121
        %1604 = vmatprep.subr.bf16.mxu0 %v1126
        %1605 = vmatpush1.bf16.msra.mxu0 %v1125
        %1606 = vmatprep.subr.bf16.mxu0 %v1130
        %1607 = vmatpush1.bf16.msra.mxu0 %v1129
        %1608 = vmatprep.subr.bf16.mxu0 %v1134
        %1609 = vmatpush1.bf16.msra.mxu0 %v1133
        %1610 = vmatprep.mubr.bf16.mxu0 %v297
        %1611 = vmatmul.mubr.bf16.gmra.mrb[0].mxu0 %v296
        %v1612 = vpop.f32.mrb[0].mxu0
        %v1613 = vadd.f32 0.0, %v1612
        %v1614 = vpop.f32.mrb[0].mxu0
        %v1615 = vadd.f32 0.0, %v1614
        %v1616 = vpop.f32.mrb[0].mxu0
        %v1617 = vpop.f32.mrb[0].mxu0
        %1618 = vdwg.mxu0
        %1619 = vmatprep.subr.bf16.mxu0 %v1138
        %1620 = vmatpush1.bf16.msra.mxu0 %v1137
        %1621 = vmatprep.subr.bf16.mxu0 %v1142
        %1622 = vmatpush1.bf16.msra.mxu0 %v1141
        %1623 = vmatprep.subr.bf16.mxu0 %v1146
        %1624 = vmatpush1.bf16.msra.mxu0 %v1145
        %1625 = vmatprep.subr.bf16.mxu0 %v1150
        %1626 = vmatpush1.bf16.msra.mxu0 %v1149
        %1627 = vmatprep.subr.bf16.mxu0 %v1154
        %1628 = vmatpush1.bf16.msra.mxu0 %v1153
        %1629 = vmatprep.subr.bf16.mxu0 %v1158
        %1630 = vmatpush1.bf16.msra.mxu0 %v1157
        %1631 = vmatprep.subr.bf16.mxu0 %v1162
        %1632 = vmatpush1.bf16.msra.mxu0 %v1161
        %1633 = vmatprep.subr.bf16.mxu0 %v1166
        %1634 = vmatpush1.bf16.msra.mxu0 %v1165
        %1635 = vmatprep.subr.bf16.mxu0 %v1170
        %1636 = vmatpush1.bf16.msra.mxu0 %v1169
        %1637 = vmatprep.subr.bf16.mxu0 %v1174
        %1638 = vmatpush1.bf16.msra.mxu0 %v1173
        %1639 = vmatprep.subr.bf16.mxu0 %v1178
        %1640 = vmatpush1.bf16.msra.mxu0 %v1177
        %1641 = vmatprep.subr.bf16.mxu0 %v1182
        %1642 = vmatpush1.bf16.msra.mxu0 %v1181
        %1643 = vmatprep.subr.bf16.mxu0 %v1186
        %1644 = vmatpush1.bf16.msra.mxu0 %v1185
        %1645 = vmatprep.subr.bf16.mxu0 %v1190
        %1646 = vmatpush1.bf16.msra.mxu0 %v1189
        %1647 = vmatprep.subr.bf16.mxu0 %v1194
        %1648 = vmatpush1.bf16.msra.mxu0 %v1193
        %1649 = vmatprep.subr.bf16.mxu0 %v1198
        %1650 = vmatpush1.bf16.msra.mxu0 %v1197
        %1651 = vmatprep.mubr.bf16.mxu0 %v299
        %1652 = vmatmul.mubr.bf16.gmra.mrb[0].mxu0 %v298
        %v1653 = vpop.f32.mrb[0].mxu0
        %v1654 = vadd.f32 %v1613, %v1653
        %v1655 = vpop.f32.mrb[0].mxu0
        %v1656 = vadd.f32 %v1615, %v1655
        %v1657 = vpop.f32.mrb[0].mxu0
        %v1658 = vpop.f32.mrb[0].mxu0
        %1659 = vdwg.mxu0
        %1660 = vmatprep.subr.bf16.mxu0 %v1202
        %1661 = vmatpush1.bf16.msra.mxu0 %v1201
        %1662 = vmatprep.subr.bf16.mxu0 %v1206
        %1663 = vmatpush1.bf16.msra.mxu0 %v1205
        %1664 = vmatprep.subr.bf16.mxu0 %v1210
        %1665 = vmatpush1.bf16.msra.mxu0 %v1209
        %1666 = vmatprep.subr.bf16.mxu0 %v1214
        %1667 = vmatpush1.bf16.msra.mxu0 %v1213
        %1668 = vmatprep.subr.bf16.mxu0 %v1218
        %1669 = vmatpush1.bf16.msra.mxu0 %v1217
        %1670 = vmatprep.subr.bf16.mxu0 %v1222
        %1671 = vmatpush1.bf16.msra.mxu0 %v1221
        %1672 = vmatprep.subr.bf16.mxu0 %v1226
        %1673 = vmatpush1.bf16.msra.mxu0 %v1225
        %1674 = vmatprep.subr.bf16.mxu0 %v1230
        %1675 = vmatpush1.bf16.msra.mxu0 %v1229
        %1676 = vmatprep.subr.bf16.mxu0 %v1234
        %1677 = vmatpush1.bf16.msra.mxu0 %v1233
        %1678 = vmatprep.subr.bf16.mxu0 %v1238
        %1679 = vmatpush1.bf16.msra.mxu0 %v1237
        %1680 = vmatprep.subr.bf16.mxu0 %v1242
        %1681 = vmatpush1.bf16.msra.mxu0 %v1241
        %1682 = vmatprep.subr.bf16.mxu0 %v1246
        %1683 = vmatpush1.bf16.msra.mxu0 %v1245
        %1684 = vmatprep.subr.bf16.mxu0 %v1250
        %1685 = vmatpush1.bf16.msra.mxu0 %v1249
        %1686 = vmatprep.subr.bf16.mxu0 %v1254
        %1687 = vmatpush1.bf16.msra.mxu0 %v1253
        %1688 = vmatprep.subr.bf16.mxu0 %v1258
        %1689 = vmatpush1.bf16.msra.mxu0 %v1257
        %1690 = vmatprep.subr.bf16.mxu0 %v1262
        %1691 = vmatpush1.bf16.msra.mxu0 %v1261
        %1692 = vmatprep.mubr.bf16.mxu0 %v301
        %1693 = vmatmul.mubr.bf16.gmra.mrb[0].mxu0 %v300
        %v1694 = vpop.f32.mrb[0].mxu0
        %v1695 = vadd.f32 %v1654, %v1694
        %v1696 = vpop.f32.mrb[0].mxu0
        %v1697 = vadd.f32 %v1656, %v1696
        %v1698 = vpop.f32.mrb[0].mxu0
        %v1699 = vpop.f32.mrb[0].mxu0
        %1700 = vdwg.mxu0
        %v1705 = vcombine.low %v1572, %v1574
        %v1706 = vcombine.low %v1695, %v1697
        %v1708 = vunpack.c.l.s4 1983009808
        %v1709 = vunpack.c.0.s8 %v1708
        %v1710 = vlaneseq
        %v1711 = vshrl.u32 %v1710, 7
        %v1712 = vsub.s32 %v1709, %v1711
        %v1713 = vrot.slane %v1705, %v1712
        %v1715 = vunpack.c.l.s4 1983009808
        %v1716 = vunpack.c.0.s8 %v1715
        %v1717 = vlaneseq
        %v1718 = vshrl.u32 %v1717, 7
        %v1719 = vsub.s32 %v1716, %v1718
        %v1720 = vrot.slane %v1706, %v1719
        %v1721 = vcombine.low %v1713, %v1720
        %v1723 = vadd.f32 %v302, %v1721
        %1724 = vst [vmem:[#allocation2] sm:$0xff] %v1723
        // Predicated region
        $region41: #{specious_loss.3} parent=31 // pred_check
          %p1725 = pneg %p252
        $region42: #{specious_loss.3} parent=31 // pred_check_branch
          %1727 = sbr.rel (%p1725) target = $region44
        $region43: #{specious_loss.3} parent=31 // pred_region
          %v1728 = vld [vmem:[#allocation2] sm:$0xff]
          %v1729 = vmul.f32 %v1728, %v1728
          %v1731 = vcombine.high %v1729, %v1729
          %v1733 = vunpack.c.l.s4 1983009808
          %v1734 = vunpack.c.0.s8 %v1733
          %v1735 = vlaneseq
          %v1736 = vshrl.u32 %v1735, 7
          %v1737 = vsub.s32 %v1734, %v1736
          %v1738 = vrot.slane %v1729, %v1737
          %v1740 = vunpack.c.l.s4 1983009808
          %v1741 = vunpack.c.0.s8 %v1740
          %v1742 = vlaneseq
          %v1743 = vshrl.u32 %v1742, 7
          %v1744 = vsub.s32 %v1741, %v1743
          %v1745 = vrot.slane %v1731, %v1744
          %v1746 = vcombine.high %v1738, %v1738
          %v1747 = vcombine.high %v1745, %v1745
          %vm1752 = vcmask 1041408
          %v1753 = vsel %vm1752, %v1738, 0.0
          %v1754 = vsel %vm1752, %v1746, 0.0
          %v1755 = vadd.f32 %v1753, %v1754
          %v1756 = vsel %vm1752, %v1745, 0.0
          %v1757 = vadd.f32 %v1755, %v1756
          %v1758 = vsel %vm1752, %v1747, 0.0
          %v1759 = vadd.f32 %v1757, %v1758
          %1760 = vadd.xlane.f32.xlu0 %v1759
          %v1761 = vpop.xlane.xlu0 %1760
          %v1762 = vrot.slane %v1761, 4
          %v1763 = vadd.f32 %v1761, %v1762
          %v1764 = vrot.slane %v1763, 2
          %v1765 = vadd.f32 %v1763, %v1764
          %v1766 = vrot.slane %v1765, 1
          %v1767 = vadd.f32 %v1765, %v1766
          %s1768 = vtos %v1767
          %v1769 = vstv %s1768
          %1770 = vst [vmem:[%s251] sm:$0xff] %v1769
        $region44: #{specious_loss.3} parent=31 // pred_fallthru
          _
        %p1771 = scmp.lt.s32.totalorder %s21, 4
        %s1772 = scalar_select %p1771, %s21, 4
        %s1773 = smul.addr %s1772, 8
        %s1774 = scalar_lea.vmem %s3, %s1773
        // Predicated region
        $region45: #{specious_loss.3} parent=31 // pred_check
          %p1775 = pneg %p127
        $region46: #{specious_loss.3} parent=31 // pred_check_branch
          %1777 = sbr.rel (%p1775) target = $region48
        $region47: #{specious_loss.3} parent=31 // pred_region
          _
        $region48: #{specious_loss.3} parent=31 // pred_fallthru
          _
      $region32: #{specious_loss.3} parent=5 // pred_fallthru
        _
      %p1778 = scmp.le.s32.totalorder 2, %s12
      // Predicated region
      $region49: #{specious_loss.3} parent=5 // pred_check
        %p1779 = pneg %p1778
      $region50: #{specious_loss.3} parent=5 // pred_check_branch
        %1781 = sbr.rel (%p1779) target = $region52
      $region51: #{specious_loss.3} parent=5 // pred_region
        %s1782 = ssub.s32 %s12, 2
        // Predicated region
        $region53: #{specious_loss.3} parent=51 // pred_check
          %p1783 = pneg %p133
        $region54: #{specious_loss.3} parent=51 // pred_check_branch
          %1785 = sbr.rel (%p1783) target = $region56
        $region55: #{specious_loss.3} parent=51 // pred_region
          %p1786 = scmp.lt.s32.totalorder %s23, 4
          %s1787 = scalar_select %p1786, %s23, 4
          %s1788 = smul.addr %s1787, 8
          %s1789 = scalar_lea.vmem %s3, %s1788
        $region56: #{specious_loss.3} parent=51 // pred_fallthru
          _
      $region52: #{specious_loss.3} parent=5 // pred_fallthru
        _
    $region6: #{specious_loss.3} parent=1 // loop_footer
      %s16 = sadd.s32 1, %s12
    $region7: #{specious_loss.3} parent=1 // loop_footer_branch
      %11 = sbr.rel target = $region3
    $region8: #{specious_loss.3} parent=1 // loop_exit
      _
    %1790 = vsyncpa [#allocation4], 1
    %s1791 = scalar_lea.sflag [#allocation4], 1
    %1792 = vsyncpa %s1791, 1

</llo_original>
